<compile_context>
chip_gen: v7x
topology: tpu7x:2x2x1
jax: 0.10.0
libtpu: 0.0.40
codegen_flags: <defaults>
</compile_context>

<pallas_src>
import functools

import jax
import jax.numpy as jnp
from jax.experimental import pallas as pl
from jax.experimental.pallas import tpu as pltpu


def _dilated_conv_kernel(x_ref, w_ref, b_ref, o_ref, *, dilation, ksize,
                         w_out, cin, cout):
    """Dilated (1, K) conv with W on the lane axis.

    x_ref: (1, cin, TILE_H, W)        VMEM input block (natural NCHW layout)
    w_ref: (cout*cin*ksize,)          SMEM scalar taps, index (co*cin+ci)*ksize+k
    b_ref: (cout,)                    SMEM bias
    o_ref: (1, cout, TILE_H, w_out)   VMEM output block (lane-dense W_out)
    """
    tile_h = x_ref.shape[2]

    # Accumulators initialised with the bias (saves a full-tile add at the end).
    accs = [jnp.full((tile_h, w_out), b_ref[co], dtype=jnp.float32)
            for co in range(cout)]

    for ci in range(cin):
        xc = x_ref[0, ci, :, :]                               # (TILE_H, W)
        for k in range(ksize):
            # Lane-shifted tap: computed once, reused for every output channel.
            tap = xc[:, k * dilation: k * dilation + w_out]   # (TILE_H, w_out)
            for co in range(cout):
                accs[co] = accs[co] + w_ref[(co * cin + ci) * ksize + k] * tap

    for co in range(cout):
        o_ref[0, co, :, :] = accs[co].astype(o_ref.dtype)


def dilated_1d_forward(x_nchw, weight, bias, dilation_factor=2):
    """Forward pass matching nn.Conv2d(cin, cout, (1, 7), dilation=(1, d))."""
    N, Cin, H, W = x_nchw.shape
    Cout, Cin2, KH, KW = weight.shape
    assert KH == 1 and Cin2 == Cin
    w_out = W - dilation_factor * (KW - 1)
    assert w_out > 0, "input width too small for the dilated receptive field"

    # Row tile along H: multiple of 8 (sublane) when possible, otherwise the
    # full H dim (satisfies the (8,128) block constraint; keeps vreg pressure
    # bounded while giving Pallas enough per-step work to pipeline DMAs).
    if H % 8 == 0:
        tile_h = min(H, 32)
    else:
        tile_h = H
    grid = (N, pl.cdiv(H, tile_h))

    # (Cout, Cin, 1, KW) -> flat scalar table, index (co*Cin + ci)*KW + k.
    w_flat = weight.reshape(Cout * Cin * KW)

    kernel = functools.partial(
        _dilated_conv_kernel, dilation=dilation_factor, ksize=KW,
        w_out=w_out, cin=Cin, cout=Cout)

    # TODO(synk): if W grows very large, additionally tile W with a
    # dilation*(KW-1) halo; not needed for the sequence lengths this module
    # is used with.
    return pl.pallas_call(
        kernel,
        out_shape=jax.ShapeDtypeStruct((N, Cout, H, w_out), x_nchw.dtype),
        grid=grid,
        in_specs=[
            pl.BlockSpec((1, Cin, tile_h, W), lambda n, h: (n, 0, h, 0)),
            pl.BlockSpec(memory_space=pltpu.MemorySpace.SMEM),
            pl.BlockSpec(memory_space=pltpu.MemorySpace.SMEM),
        ],
        out_specs=pl.BlockSpec((1, Cout, tile_h, w_out),
                               lambda n, h: (n, 0, h, 0)),
        compiler_params=pltpu.CompilerParams(
            dimension_semantics=("parallel", "parallel")),
    )(x_nchw, w_flat, bias)


if __name__ == "__main__":
    # Small deterministic setup consistent with the module:
    # cin=4, cout=8, dilation_factor=2, kernel (1,7) -> needs W >= 13.
    N, Cin, Cout, H, W = 2, 4, 8, 4, 16
    dilation_factor = 2
    KW = 7

    key = jax.random.PRNGKey(0)
    kx, kw, kb = jax.random.split(key, 3)

    x = jax.random.normal(kx, (N, Cin, H, W), dtype=jnp.float32)
    # Deterministic Conv2d-style init (synthetic, not a checkpoint load).
    fan_in = Cin * 1 * KW
    bound = 1.0 / (fan_in ** 0.5)
    weight = jax.random.uniform(
        kw, (Cout, Cin, 1, KW), dtype=jnp.float32, minval=-bound, maxval=bound)
    bias = jax.random.uniform(
        kb, (Cout,), dtype=jnp.float32, minval=-bound, maxval=bound)

    out = dilated_1d_forward(x, weight, bias, dilation_factor)
    out = jax.block_until_ready(out)

    # Reference: plain-JAX dilated conv (same semantics as the PyTorch module).
    ref = jax.lax.conv_general_dilated(
        x, weight,
        window_strides=(1, 1),
        padding="VALID",
        rhs_dilation=(1, dilation_factor),
        dimension_numbers=("NCHW", "OIHW", "NCHW"),
    ) + bias[None, :, None, None]

    assert out.shape == (N, Cout, H, W - dilation_factor * (KW - 1)), out.shape
    assert jnp.allclose(out, ref, atol=1e-5, rtol=1e-5), float(
        jnp.max(jnp.abs(out - ref)))

    print("KERNEL_OK")
</pallas_src>

<mosaic_0001>
module attributes {stable_mosaic.version = 11 : i64} {
  func.func @_dilated_conv_kernel(%arg0: i32, %arg1: i32, %arg2: memref<1x4x4x16xf32, #tpu.memory_space<vmem>>, %arg3: memref<224xf32, #tpu.memory_space<smem>>, %arg4: memref<8xf32, #tpu.memory_space<smem>>, %arg5: memref<1x8x4x4xf32, #tpu.memory_space<vmem>>) attributes {dimension_semantics = [#tpu.dimension_semantics<parallel>, #tpu.dimension_semantics<parallel>], iteration_bounds = array<i64: 2, 1>, scalar_prefetch = 0 : i64, scratch_operands = 0 : i64, tpu.core_type = #tpu.core_type<tc>, window_params = [{transform_indices = @transform_0, window_bounds = array<i64: 1, 4, 4, 16>}, {transform_indices = @transform_1, window_bounds = array<i64: 224>}, {transform_indices = @transform_2, window_bounds = array<i64: 8>}, {transform_indices = @transform_3, window_bounds = array<i64: 1, 8, 4, 4>}]} {
    %c0 = arith.constant 0 : index
    %0 = memref.load %arg4[%c0] : memref<8xf32, #tpu.memory_space<smem>>
    %1 = vector.broadcast %0 : f32 to vector<4x4xf32>
    %c1 = arith.constant 1 : index
    %2 = memref.load %arg4[%c1] : memref<8xf32, #tpu.memory_space<smem>>
    %3 = vector.broadcast %2 : f32 to vector<4x4xf32>
    %c2 = arith.constant 2 : index
    %4 = memref.load %arg4[%c2] : memref<8xf32, #tpu.memory_space<smem>>
    %5 = vector.broadcast %4 : f32 to vector<4x4xf32>
    %c3 = arith.constant 3 : index
    %6 = memref.load %arg4[%c3] : memref<8xf32, #tpu.memory_space<smem>>
    %7 = vector.broadcast %6 : f32 to vector<4x4xf32>
    %c4 = arith.constant 4 : index
    %8 = memref.load %arg4[%c4] : memref<8xf32, #tpu.memory_space<smem>>
    %9 = vector.broadcast %8 : f32 to vector<4x4xf32>
    %c5 = arith.constant 5 : index
    %10 = memref.load %arg4[%c5] : memref<8xf32, #tpu.memory_space<smem>>
    %11 = vector.broadcast %10 : f32 to vector<4x4xf32>
    %c6 = arith.constant 6 : index
    %12 = memref.load %arg4[%c6] : memref<8xf32, #tpu.memory_space<smem>>
    %13 = vector.broadcast %12 : f32 to vector<4x4xf32>
    %c7 = arith.constant 7 : index
    %14 = memref.load %arg4[%c7] : memref<8xf32, #tpu.memory_space<smem>>
    %15 = vector.broadcast %14 : f32 to vector<4x4xf32>
    %c0_0 = arith.constant 0 : index
    %c0_1 = arith.constant 0 : index
    %c0_2 = arith.constant 0 : index
    %c0_3 = arith.constant 0 : index
    %16 = vector.load %arg2[%c0_0, %c0_1, %c0_2, %c0_3] : memref<1x4x4x16xf32, #tpu.memory_space<vmem>>, vector<1x1x4x16xf32>
    %17 = vector.shape_cast %16 : vector<1x1x4x16xf32> to vector<4x16xf32>
    %18 = vector.extract_strided_slice %17 {offsets = [0, 0], sizes = [4, 4], strides = [1, 1]} : vector<4x16xf32> to vector<4x4xf32>
    %c0_4 = arith.constant 0 : index
    %19 = memref.load %arg3[%c0_4] : memref<224xf32, #tpu.memory_space<smem>>
    %20 = vector.broadcast %19 : f32 to vector<4x4xf32>
    %21 = arith.mulf %20, %18 : vector<4x4xf32>
    %22 = arith.addf %1, %21 : vector<4x4xf32>
    %c28 = arith.constant 28 : index
    %23 = memref.load %arg3[%c28] : memref<224xf32, #tpu.memory_space<smem>>
    %24 = vector.broadcast %23 : f32 to vector<4x4xf32>
    %25 = arith.mulf %24, %18 : vector<4x4xf32>
    %26 = arith.addf %3, %25 : vector<4x4xf32>
    %c56 = arith.constant 56 : index
    %27 = memref.load %arg3[%c56] : memref<224xf32, #tpu.memory_space<smem>>
    %28 = vector.broadcast %27 : f32 to vector<4x4xf32>
    %29 = arith.mulf %28, %18 : vector<4x4xf32>
    %30 = arith.addf %5, %29 : vector<4x4xf32>
    %c84 = arith.constant 84 : index
    %31 = memref.load %arg3[%c84] : memref<224xf32, #tpu.memory_space<smem>>
    %32 = vector.broadcast %31 : f32 to vector<4x4xf32>
    %33 = arith.mulf %32, %18 : vector<4x4xf32>
    %34 = arith.addf %7, %33 : vector<4x4xf32>
    %c112 = arith.constant 112 : index
    %35 = memref.load %arg3[%c112] : memref<224xf32, #tpu.memory_space<smem>>
    %36 = vector.broadcast %35 : f32 to vector<4x4xf32>
    %37 = arith.mulf %36, %18 : vector<4x4xf32>
    %38 = arith.addf %9, %37 : vector<4x4xf32>
    %c140 = arith.constant 140 : index
    %39 = memref.load %arg3[%c140] : memref<224xf32, #tpu.memory_space<smem>>
    %40 = vector.broadcast %39 : f32 to vector<4x4xf32>
    %41 = arith.mulf %40, %18 : vector<4x4xf32>
    %42 = arith.addf %11, %41 : vector<4x4xf32>
    %c168 = arith.constant 168 : index
    %43 = memref.load %arg3[%c168] : memref<224xf32, #tpu.memory_space<smem>>
    %44 = vector.broadcast %43 : f32 to vector<4x4xf32>
    %45 = arith.mulf %44, %18 : vector<4x4xf32>
    %46 = arith.addf %13, %45 : vector<4x4xf32>
    %c196 = arith.constant 196 : index
    %47 = memref.load %arg3[%c196] : memref<224xf32, #tpu.memory_space<smem>>
    %48 = vector.broadcast %47 : f32 to vector<4x4xf32>
    %49 = arith.mulf %48, %18 : vector<4x4xf32>
    %50 = arith.addf %15, %49 : vector<4x4xf32>
    %51 = vector.extract_strided_slice %17 {offsets = [0, 2], sizes = [4, 4], strides = [1, 1]} : vector<4x16xf32> to vector<4x4xf32>
    %c1_5 = arith.constant 1 : index
    %52 = memref.load %arg3[%c1_5] : memref<224xf32, #tpu.memory_space<smem>>
    %53 = vector.broadcast %52 : f32 to vector<4x4xf32>
    %54 = arith.mulf %53, %51 : vector<4x4xf32>
    %55 = arith.addf %22, %54 : vector<4x4xf32>
    %c29 = arith.constant 29 : index
    %56 = memref.load %arg3[%c29] : memref<224xf32, #tpu.memory_space<smem>>
    %57 = vector.broadcast %56 : f32 to vector<4x4xf32>
    %58 = arith.mulf %57, %51 : vector<4x4xf32>
    %59 = arith.addf %26, %58 : vector<4x4xf32>
    %c57 = arith.constant 57 : index
    %60 = memref.load %arg3[%c57] : memref<224xf32, #tpu.memory_space<smem>>
    %61 = vector.broadcast %60 : f32 to vector<4x4xf32>
    %62 = arith.mulf %61, %51 : vector<4x4xf32>
    %63 = arith.addf %30, %62 : vector<4x4xf32>
    %c85 = arith.constant 85 : index
    %64 = memref.load %arg3[%c85] : memref<224xf32, #tpu.memory_space<smem>>
    %65 = vector.broadcast %64 : f32 to vector<4x4xf32>
    %66 = arith.mulf %65, %51 : vector<4x4xf32>
    %67 = arith.addf %34, %66 : vector<4x4xf32>
    %c113 = arith.constant 113 : index
    %68 = memref.load %arg3[%c113] : memref<224xf32, #tpu.memory_space<smem>>
    %69 = vector.broadcast %68 : f32 to vector<4x4xf32>
    %70 = arith.mulf %69, %51 : vector<4x4xf32>
    %71 = arith.addf %38, %70 : vector<4x4xf32>
    %c141 = arith.constant 141 : index
    %72 = memref.load %arg3[%c141] : memref<224xf32, #tpu.memory_space<smem>>
    %73 = vector.broadcast %72 : f32 to vector<4x4xf32>
    %74 = arith.mulf %73, %51 : vector<4x4xf32>
    %75 = arith.addf %42, %74 : vector<4x4xf32>
    %c169 = arith.constant 169 : index
    %76 = memref.load %arg3[%c169] : memref<224xf32, #tpu.memory_space<smem>>
    %77 = vector.broadcast %76 : f32 to vector<4x4xf32>
    %78 = arith.mulf %77, %51 : vector<4x4xf32>
    %79 = arith.addf %46, %78 : vector<4x4xf32>
    %c197 = arith.constant 197 : index
    %80 = memref.load %arg3[%c197] : memref<224xf32, #tpu.memory_space<smem>>
    %81 = vector.broadcast %80 : f32 to vector<4x4xf32>
    %82 = arith.mulf %81, %51 : vector<4x4xf32>
    %83 = arith.addf %50, %82 : vector<4x4xf32>
    %84 = vector.extract_strided_slice %17 {offsets = [0, 4], sizes = [4, 4], strides = [1, 1]} : vector<4x16xf32> to vector<4x4xf32>
    %c2_6 = arith.constant 2 : index
    %85 = memref.load %arg3[%c2_6] : memref<224xf32, #tpu.memory_space<smem>>
    %86 = vector.broadcast %85 : f32 to vector<4x4xf32>
    %87 = arith.mulf %86, %84 : vector<4x4xf32>
    %88 = arith.addf %55, %87 : vector<4x4xf32>
    %c30 = arith.constant 30 : index
    %89 = memref.load %arg3[%c30] : memref<224xf32, #tpu.memory_space<smem>>
    %90 = vector.broadcast %89 : f32 to vector<4x4xf32>
    %91 = arith.mulf %90, %84 : vector<4x4xf32>
    %92 = arith.addf %59, %91 : vector<4x4xf32>
    %c58 = arith.constant 58 : index
    %93 = memref.load %arg3[%c58] : memref<224xf32, #tpu.memory_space<smem>>
    %94 = vector.broadcast %93 : f32 to vector<4x4xf32>
    %95 = arith.mulf %94, %84 : vector<4x4xf32>
    %96 = arith.addf %63, %95 : vector<4x4xf32>
    %c86 = arith.constant 86 : index
    %97 = memref.load %arg3[%c86] : memref<224xf32, #tpu.memory_space<smem>>
    %98 = vector.broadcast %97 : f32 to vector<4x4xf32>
    %99 = arith.mulf %98, %84 : vector<4x4xf32>
    %100 = arith.addf %67, %99 : vector<4x4xf32>
    %c114 = arith.constant 114 : index
    %101 = memref.load %arg3[%c114] : memref<224xf32, #tpu.memory_space<smem>>
    %102 = vector.broadcast %101 : f32 to vector<4x4xf32>
    %103 = arith.mulf %102, %84 : vector<4x4xf32>
    %104 = arith.addf %71, %103 : vector<4x4xf32>
    %c142 = arith.constant 142 : index
    %105 = memref.load %arg3[%c142] : memref<224xf32, #tpu.memory_space<smem>>
    %106 = vector.broadcast %105 : f32 to vector<4x4xf32>
    %107 = arith.mulf %106, %84 : vector<4x4xf32>
    %108 = arith.addf %75, %107 : vector<4x4xf32>
    %c170 = arith.constant 170 : index
    %109 = memref.load %arg3[%c170] : memref<224xf32, #tpu.memory_space<smem>>
    %110 = vector.broadcast %109 : f32 to vector<4x4xf32>
    %111 = arith.mulf %110, %84 : vector<4x4xf32>
    %112 = arith.addf %79, %111 : vector<4x4xf32>
    %c198 = arith.constant 198 : index
    %113 = memref.load %arg3[%c198] : memref<224xf32, #tpu.memory_space<smem>>
    %114 = vector.broadcast %113 : f32 to vector<4x4xf32>
    %115 = arith.mulf %114, %84 : vector<4x4xf32>
    %116 = arith.addf %83, %115 : vector<4x4xf32>
    %117 = vector.extract_strided_slice %17 {offsets = [0, 6], sizes = [4, 4], strides = [1, 1]} : vector<4x16xf32> to vector<4x4xf32>
    %c3_7 = arith.constant 3 : index
    %118 = memref.load %arg3[%c3_7] : memref<224xf32, #tpu.memory_space<smem>>
    %119 = vector.broadcast %118 : f32 to vector<4x4xf32>
    %120 = arith.mulf %119, %117 : vector<4x4xf32>
    %121 = arith.addf %88, %120 : vector<4x4xf32>
    %c31 = arith.constant 31 : index
    %122 = memref.load %arg3[%c31] : memref<224xf32, #tpu.memory_space<smem>>
    %123 = vector.broadcast %122 : f32 to vector<4x4xf32>
    %124 = arith.mulf %123, %117 : vector<4x4xf32>
    %125 = arith.addf %92, %124 : vector<4x4xf32>
    %c59 = arith.constant 59 : index
    %126 = memref.load %arg3[%c59] : memref<224xf32, #tpu.memory_space<smem>>
    %127 = vector.broadcast %126 : f32 to vector<4x4xf32>
    %128 = arith.mulf %127, %117 : vector<4x4xf32>
    %129 = arith.addf %96, %128 : vector<4x4xf32>
    %c87 = arith.constant 87 : index
    %130 = memref.load %arg3[%c87] : memref<224xf32, #tpu.memory_space<smem>>
    %131 = vector.broadcast %130 : f32 to vector<4x4xf32>
    %132 = arith.mulf %131, %117 : vector<4x4xf32>
    %133 = arith.addf %100, %132 : vector<4x4xf32>
    %c115 = arith.constant 115 : index
    %134 = memref.load %arg3[%c115] : memref<224xf32, #tpu.memory_space<smem>>
    %135 = vector.broadcast %134 : f32 to vector<4x4xf32>
    %136 = arith.mulf %135, %117 : vector<4x4xf32>
    %137 = arith.addf %104, %136 : vector<4x4xf32>
    %c143 = arith.constant 143 : index
    %138 = memref.load %arg3[%c143] : memref<224xf32, #tpu.memory_space<smem>>
    %139 = vector.broadcast %138 : f32 to vector<4x4xf32>
    %140 = arith.mulf %139, %117 : vector<4x4xf32>
    %141 = arith.addf %108, %140 : vector<4x4xf32>
    %c171 = arith.constant 171 : index
    %142 = memref.load %arg3[%c171] : memref<224xf32, #tpu.memory_space<smem>>
    %143 = vector.broadcast %142 : f32 to vector<4x4xf32>
    %144 = arith.mulf %143, %117 : vector<4x4xf32>
    %145 = arith.addf %112, %144 : vector<4x4xf32>
    %c199 = arith.constant 199 : index
    %146 = memref.load %arg3[%c199] : memref<224xf32, #tpu.memory_space<smem>>
    %147 = vector.broadcast %146 : f32 to vector<4x4xf32>
    %148 = arith.mulf %147, %117 : vector<4x4xf32>
    %149 = arith.addf %116, %148 : vector<4x4xf32>
    %150 = vector.extract_strided_slice %17 {offsets = [0, 8], sizes = [4, 4], strides = [1, 1]} : vector<4x16xf32> to vector<4x4xf32>
    %c4_8 = arith.constant 4 : index
    %151 = memref.load %arg3[%c4_8] : memref<224xf32, #tpu.memory_space<smem>>
    %152 = vector.broadcast %151 : f32 to vector<4x4xf32>
    %153 = arith.mulf %152, %150 : vector<4x4xf32>
    %154 = arith.addf %121, %153 : vector<4x4xf32>
    %c32 = arith.constant 32 : index
    %155 = memref.load %arg3[%c32] : memref<224xf32, #tpu.memory_space<smem>>
    %156 = vector.broadcast %155 : f32 to vector<4x4xf32>
    %157 = arith.mulf %156, %150 : vector<4x4xf32>
    %158 = arith.addf %125, %157 : vector<4x4xf32>
    %c60 = arith.constant 60 : index
    %159 = memref.load %arg3[%c60] : memref<224xf32, #tpu.memory_space<smem>>
    %160 = vector.broadcast %159 : f32 to vector<4x4xf32>
    %161 = arith.mulf %160, %150 : vector<4x4xf32>
    %162 = arith.addf %129, %161 : vector<4x4xf32>
    %c88 = arith.constant 88 : index
    %163 = memref.load %arg3[%c88] : memref<224xf32, #tpu.memory_space<smem>>
    %164 = vector.broadcast %163 : f32 to vector<4x4xf32>
    %165 = arith.mulf %164, %150 : vector<4x4xf32>
    %166 = arith.addf %133, %165 : vector<4x4xf32>
    %c116 = arith.constant 116 : index
    %167 = memref.load %arg3[%c116] : memref<224xf32, #tpu.memory_space<smem>>
    %168 = vector.broadcast %167 : f32 to vector<4x4xf32>
    %169 = arith.mulf %168, %150 : vector<4x4xf32>
    %170 = arith.addf %137, %169 : vector<4x4xf32>
    %c144 = arith.constant 144 : index
    %171 = memref.load %arg3[%c144] : memref<224xf32, #tpu.memory_space<smem>>
    %172 = vector.broadcast %171 : f32 to vector<4x4xf32>
    %173 = arith.mulf %172, %150 : vector<4x4xf32>
    %174 = arith.addf %141, %173 : vector<4x4xf32>
    %c172 = arith.constant 172 : index
    %175 = memref.load %arg3[%c172] : memref<224xf32, #tpu.memory_space<smem>>
    %176 = vector.broadcast %175 : f32 to vector<4x4xf32>
    %177 = arith.mulf %176, %150 : vector<4x4xf32>
    %178 = arith.addf %145, %177 : vector<4x4xf32>
    %c200 = arith.constant 200 : index
    %179 = memref.load %arg3[%c200] : memref<224xf32, #tpu.memory_space<smem>>
    %180 = vector.broadcast %179 : f32 to vector<4x4xf32>
    %181 = arith.mulf %180, %150 : vector<4x4xf32>
    %182 = arith.addf %149, %181 : vector<4x4xf32>
    %183 = vector.extract_strided_slice %17 {offsets = [0, 10], sizes = [4, 4], strides = [1, 1]} : vector<4x16xf32> to vector<4x4xf32>
    %c5_9 = arith.constant 5 : index
    %184 = memref.load %arg3[%c5_9] : memref<224xf32, #tpu.memory_space<smem>>
    %185 = vector.broadcast %184 : f32 to vector<4x4xf32>
    %186 = arith.mulf %185, %183 : vector<4x4xf32>
    %187 = arith.addf %154, %186 : vector<4x4xf32>
    %c33 = arith.constant 33 : index
    %188 = memref.load %arg3[%c33] : memref<224xf32, #tpu.memory_space<smem>>
    %189 = vector.broadcast %188 : f32 to vector<4x4xf32>
    %190 = arith.mulf %189, %183 : vector<4x4xf32>
    %191 = arith.addf %158, %190 : vector<4x4xf32>
    %c61 = arith.constant 61 : index
    %192 = memref.load %arg3[%c61] : memref<224xf32, #tpu.memory_space<smem>>
    %193 = vector.broadcast %192 : f32 to vector<4x4xf32>
    %194 = arith.mulf %193, %183 : vector<4x4xf32>
    %195 = arith.addf %162, %194 : vector<4x4xf32>
    %c89 = arith.constant 89 : index
    %196 = memref.load %arg3[%c89] : memref<224xf32, #tpu.memory_space<smem>>
    %197 = vector.broadcast %196 : f32 to vector<4x4xf32>
    %198 = arith.mulf %197, %183 : vector<4x4xf32>
    %199 = arith.addf %166, %198 : vector<4x4xf32>
    %c117 = arith.constant 117 : index
    %200 = memref.load %arg3[%c117] : memref<224xf32, #tpu.memory_space<smem>>
    %201 = vector.broadcast %200 : f32 to vector<4x4xf32>
    %202 = arith.mulf %201, %183 : vector<4x4xf32>
    %203 = arith.addf %170, %202 : vector<4x4xf32>
    %c145 = arith.constant 145 : index
    %204 = memref.load %arg3[%c145] : memref<224xf32, #tpu.memory_space<smem>>
    %205 = vector.broadcast %204 : f32 to vector<4x4xf32>
    %206 = arith.mulf %205, %183 : vector<4x4xf32>
    %207 = arith.addf %174, %206 : vector<4x4xf32>
    %c173 = arith.constant 173 : index
    %208 = memref.load %arg3[%c173] : memref<224xf32, #tpu.memory_space<smem>>
    %209 = vector.broadcast %208 : f32 to vector<4x4xf32>
    %210 = arith.mulf %209, %183 : vector<4x4xf32>
    %211 = arith.addf %178, %210 : vector<4x4xf32>
    %c201 = arith.constant 201 : index
    %212 = memref.load %arg3[%c201] : memref<224xf32, #tpu.memory_space<smem>>
    %213 = vector.broadcast %212 : f32 to vector<4x4xf32>
    %214 = arith.mulf %213, %183 : vector<4x4xf32>
    %215 = arith.addf %182, %214 : vector<4x4xf32>
    %216 = vector.extract_strided_slice %17 {offsets = [0, 12], sizes = [4, 4], strides = [1, 1]} : vector<4x16xf32> to vector<4x4xf32>
    %c6_10 = arith.constant 6 : index
    %217 = memref.load %arg3[%c6_10] : memref<224xf32, #tpu.memory_space<smem>>
    %218 = vector.broadcast %217 : f32 to vector<4x4xf32>
    %219 = arith.mulf %218, %216 : vector<4x4xf32>
    %220 = arith.addf %187, %219 : vector<4x4xf32>
    %c34 = arith.constant 34 : index
    %221 = memref.load %arg3[%c34] : memref<224xf32, #tpu.memory_space<smem>>
    %222 = vector.broadcast %221 : f32 to vector<4x4xf32>
    %223 = arith.mulf %222, %216 : vector<4x4xf32>
    %224 = arith.addf %191, %223 : vector<4x4xf32>
    %c62 = arith.constant 62 : index
    %225 = memref.load %arg3[%c62] : memref<224xf32, #tpu.memory_space<smem>>
    %226 = vector.broadcast %225 : f32 to vector<4x4xf32>
    %227 = arith.mulf %226, %216 : vector<4x4xf32>
    %228 = arith.addf %195, %227 : vector<4x4xf32>
    %c90 = arith.constant 90 : index
    %229 = memref.load %arg3[%c90] : memref<224xf32, #tpu.memory_space<smem>>
    %230 = vector.broadcast %229 : f32 to vector<4x4xf32>
    %231 = arith.mulf %230, %216 : vector<4x4xf32>
    %232 = arith.addf %199, %231 : vector<4x4xf32>
    %c118 = arith.constant 118 : index
    %233 = memref.load %arg3[%c118] : memref<224xf32, #tpu.memory_space<smem>>
    %234 = vector.broadcast %233 : f32 to vector<4x4xf32>
    %235 = arith.mulf %234, %216 : vector<4x4xf32>
    %236 = arith.addf %203, %235 : vector<4x4xf32>
    %c146 = arith.constant 146 : index
    %237 = memref.load %arg3[%c146] : memref<224xf32, #tpu.memory_space<smem>>
    %238 = vector.broadcast %237 : f32 to vector<4x4xf32>
    %239 = arith.mulf %238, %216 : vector<4x4xf32>
    %240 = arith.addf %207, %239 : vector<4x4xf32>
    %c174 = arith.constant 174 : index
    %241 = memref.load %arg3[%c174] : memref<224xf32, #tpu.memory_space<smem>>
    %242 = vector.broadcast %241 : f32 to vector<4x4xf32>
    %243 = arith.mulf %242, %216 : vector<4x4xf32>
    %244 = arith.addf %211, %243 : vector<4x4xf32>
    %c202 = arith.constant 202 : index
    %245 = memref.load %arg3[%c202] : memref<224xf32, #tpu.memory_space<smem>>
    %246 = vector.broadcast %245 : f32 to vector<4x4xf32>
    %247 = arith.mulf %246, %216 : vector<4x4xf32>
    %248 = arith.addf %215, %247 : vector<4x4xf32>
    %c0_11 = arith.constant 0 : index
    %c1_12 = arith.constant 1 : index
    %c0_13 = arith.constant 0 : index
    %c0_14 = arith.constant 0 : index
    %249 = vector.load %arg2[%c0_11, %c1_12, %c0_13, %c0_14] : memref<1x4x4x16xf32, #tpu.memory_space<vmem>>, vector<1x1x4x16xf32>
    %250 = vector.shape_cast %249 : vector<1x1x4x16xf32> to vector<4x16xf32>
    %251 = vector.extract_strided_slice %250 {offsets = [0, 0], sizes = [4, 4], strides = [1, 1]} : vector<4x16xf32> to vector<4x4xf32>
    %c7_15 = arith.constant 7 : index
    %252 = memref.load %arg3[%c7_15] : memref<224xf32, #tpu.memory_space<smem>>
    %253 = vector.broadcast %252 : f32 to vector<4x4xf32>
    %254 = arith.mulf %253, %251 : vector<4x4xf32>
    %255 = arith.addf %220, %254 : vector<4x4xf32>
    %c35 = arith.constant 35 : index
    %256 = memref.load %arg3[%c35] : memref<224xf32, #tpu.memory_space<smem>>
    %257 = vector.broadcast %256 : f32 to vector<4x4xf32>
    %258 = arith.mulf %257, %251 : vector<4x4xf32>
    %259 = arith.addf %224, %258 : vector<4x4xf32>
    %c63 = arith.constant 63 : index
    %260 = memref.load %arg3[%c63] : memref<224xf32, #tpu.memory_space<smem>>
    %261 = vector.broadcast %260 : f32 to vector<4x4xf32>
    %262 = arith.mulf %261, %251 : vector<4x4xf32>
    %263 = arith.addf %228, %262 : vector<4x4xf32>
    %c91 = arith.constant 91 : index
    %264 = memref.load %arg3[%c91] : memref<224xf32, #tpu.memory_space<smem>>
    %265 = vector.broadcast %264 : f32 to vector<4x4xf32>
    %266 = arith.mulf %265, %251 : vector<4x4xf32>
    %267 = arith.addf %232, %266 : vector<4x4xf32>
    %c119 = arith.constant 119 : index
    %268 = memref.load %arg3[%c119] : memref<224xf32, #tpu.memory_space<smem>>
    %269 = vector.broadcast %268 : f32 to vector<4x4xf32>
    %270 = arith.mulf %269, %251 : vector<4x4xf32>
    %271 = arith.addf %236, %270 : vector<4x4xf32>
    %c147 = arith.constant 147 : index
    %272 = memref.load %arg3[%c147] : memref<224xf32, #tpu.memory_space<smem>>
    %273 = vector.broadcast %272 : f32 to vector<4x4xf32>
    %274 = arith.mulf %273, %251 : vector<4x4xf32>
    %275 = arith.addf %240, %274 : vector<4x4xf32>
    %c175 = arith.constant 175 : index
    %276 = memref.load %arg3[%c175] : memref<224xf32, #tpu.memory_space<smem>>
    %277 = vector.broadcast %276 : f32 to vector<4x4xf32>
    %278 = arith.mulf %277, %251 : vector<4x4xf32>
    %279 = arith.addf %244, %278 : vector<4x4xf32>
    %c203 = arith.constant 203 : index
    %280 = memref.load %arg3[%c203] : memref<224xf32, #tpu.memory_space<smem>>
    %281 = vector.broadcast %280 : f32 to vector<4x4xf32>
    %282 = arith.mulf %281, %251 : vector<4x4xf32>
    %283 = arith.addf %248, %282 : vector<4x4xf32>
    %284 = vector.extract_strided_slice %250 {offsets = [0, 2], sizes = [4, 4], strides = [1, 1]} : vector<4x16xf32> to vector<4x4xf32>
    %c8 = arith.constant 8 : index
    %285 = memref.load %arg3[%c8] : memref<224xf32, #tpu.memory_space<smem>>
    %286 = vector.broadcast %285 : f32 to vector<4x4xf32>
    %287 = arith.mulf %286, %284 : vector<4x4xf32>
    %288 = arith.addf %255, %287 : vector<4x4xf32>
    %c36 = arith.constant 36 : index
    %289 = memref.load %arg3[%c36] : memref<224xf32, #tpu.memory_space<smem>>
    %290 = vector.broadcast %289 : f32 to vector<4x4xf32>
    %291 = arith.mulf %290, %284 : vector<4x4xf32>
    %292 = arith.addf %259, %291 : vector<4x4xf32>
    %c64 = arith.constant 64 : index
    %293 = memref.load %arg3[%c64] : memref<224xf32, #tpu.memory_space<smem>>
    %294 = vector.broadcast %293 : f32 to vector<4x4xf32>
    %295 = arith.mulf %294, %284 : vector<4x4xf32>
    %296 = arith.addf %263, %295 : vector<4x4xf32>
    %c92 = arith.constant 92 : index
    %297 = memref.load %arg3[%c92] : memref<224xf32, #tpu.memory_space<smem>>
    %298 = vector.broadcast %297 : f32 to vector<4x4xf32>
    %299 = arith.mulf %298, %284 : vector<4x4xf32>
    %300 = arith.addf %267, %299 : vector<4x4xf32>
    %c120 = arith.constant 120 : index
    %301 = memref.load %arg3[%c120] : memref<224xf32, #tpu.memory_space<smem>>
    %302 = vector.broadcast %301 : f32 to vector<4x4xf32>
    %303 = arith.mulf %302, %284 : vector<4x4xf32>
    %304 = arith.addf %271, %303 : vector<4x4xf32>
    %c148 = arith.constant 148 : index
    %305 = memref.load %arg3[%c148] : memref<224xf32, #tpu.memory_space<smem>>
    %306 = vector.broadcast %305 : f32 to vector<4x4xf32>
    %307 = arith.mulf %306, %284 : vector<4x4xf32>
    %308 = arith.addf %275, %307 : vector<4x4xf32>
    %c176 = arith.constant 176 : index
    %309 = memref.load %arg3[%c176] : memref<224xf32, #tpu.memory_space<smem>>
    %310 = vector.broadcast %309 : f32 to vector<4x4xf32>
    %311 = arith.mulf %310, %284 : vector<4x4xf32>
    %312 = arith.addf %279, %311 : vector<4x4xf32>
    %c204 = arith.constant 204 : index
    %313 = memref.load %arg3[%c204] : memref<224xf32, #tpu.memory_space<smem>>
    %314 = vector.broadcast %313 : f32 to vector<4x4xf32>
    %315 = arith.mulf %314, %284 : vector<4x4xf32>
    %316 = arith.addf %283, %315 : vector<4x4xf32>
    %317 = vector.extract_strided_slice %250 {offsets = [0, 4], sizes = [4, 4], strides = [1, 1]} : vector<4x16xf32> to vector<4x4xf32>
    %c9 = arith.constant 9 : index
    %318 = memref.load %arg3[%c9] : memref<224xf32, #tpu.memory_space<smem>>
    %319 = vector.broadcast %318 : f32 to vector<4x4xf32>
    %320 = arith.mulf %319, %317 : vector<4x4xf32>
    %321 = arith.addf %288, %320 : vector<4x4xf32>
    %c37 = arith.constant 37 : index
    %322 = memref.load %arg3[%c37] : memref<224xf32, #tpu.memory_space<smem>>
    %323 = vector.broadcast %322 : f32 to vector<4x4xf32>
    %324 = arith.mulf %323, %317 : vector<4x4xf32>
    %325 = arith.addf %292, %324 : vector<4x4xf32>
    %c65 = arith.constant 65 : index
    %326 = memref.load %arg3[%c65] : memref<224xf32, #tpu.memory_space<smem>>
    %327 = vector.broadcast %326 : f32 to vector<4x4xf32>
    %328 = arith.mulf %327, %317 : vector<4x4xf32>
    %329 = arith.addf %296, %328 : vector<4x4xf32>
    %c93 = arith.constant 93 : index
    %330 = memref.load %arg3[%c93] : memref<224xf32, #tpu.memory_space<smem>>
    %331 = vector.broadcast %330 : f32 to vector<4x4xf32>
    %332 = arith.mulf %331, %317 : vector<4x4xf32>
    %333 = arith.addf %300, %332 : vector<4x4xf32>
    %c121 = arith.constant 121 : index
    %334 = memref.load %arg3[%c121] : memref<224xf32, #tpu.memory_space<smem>>
    %335 = vector.broadcast %334 : f32 to vector<4x4xf32>
    %336 = arith.mulf %335, %317 : vector<4x4xf32>
    %337 = arith.addf %304, %336 : vector<4x4xf32>
    %c149 = arith.constant 149 : index
    %338 = memref.load %arg3[%c149] : memref<224xf32, #tpu.memory_space<smem>>
    %339 = vector.broadcast %338 : f32 to vector<4x4xf32>
    %340 = arith.mulf %339, %317 : vector<4x4xf32>
    %341 = arith.addf %308, %340 : vector<4x4xf32>
    %c177 = arith.constant 177 : index
    %342 = memref.load %arg3[%c177] : memref<224xf32, #tpu.memory_space<smem>>
    %343 = vector.broadcast %342 : f32 to vector<4x4xf32>
    %344 = arith.mulf %343, %317 : vector<4x4xf32>
    %345 = arith.addf %312, %344 : vector<4x4xf32>
    %c205 = arith.constant 205 : index
    %346 = memref.load %arg3[%c205] : memref<224xf32, #tpu.memory_space<smem>>
    %347 = vector.broadcast %346 : f32 to vector<4x4xf32>
    %348 = arith.mulf %347, %317 : vector<4x4xf32>
    %349 = arith.addf %316, %348 : vector<4x4xf32>
    %350 = vector.extract_strided_slice %250 {offsets = [0, 6], sizes = [4, 4], strides = [1, 1]} : vector<4x16xf32> to vector<4x4xf32>
    %c10 = arith.constant 10 : index
    %351 = memref.load %arg3[%c10] : memref<224xf32, #tpu.memory_space<smem>>
    %352 = vector.broadcast %351 : f32 to vector<4x4xf32>
    %353 = arith.mulf %352, %350 : vector<4x4xf32>
    %354 = arith.addf %321, %353 : vector<4x4xf32>
    %c38 = arith.constant 38 : index
    %355 = memref.load %arg3[%c38] : memref<224xf32, #tpu.memory_space<smem>>
    %356 = vector.broadcast %355 : f32 to vector<4x4xf32>
    %357 = arith.mulf %356, %350 : vector<4x4xf32>
    %358 = arith.addf %325, %357 : vector<4x4xf32>
    %c66 = arith.constant 66 : index
    %359 = memref.load %arg3[%c66] : memref<224xf32, #tpu.memory_space<smem>>
    %360 = vector.broadcast %359 : f32 to vector<4x4xf32>
    %361 = arith.mulf %360, %350 : vector<4x4xf32>
    %362 = arith.addf %329, %361 : vector<4x4xf32>
    %c94 = arith.constant 94 : index
    %363 = memref.load %arg3[%c94] : memref<224xf32, #tpu.memory_space<smem>>
    %364 = vector.broadcast %363 : f32 to vector<4x4xf32>
    %365 = arith.mulf %364, %350 : vector<4x4xf32>
    %366 = arith.addf %333, %365 : vector<4x4xf32>
    %c122 = arith.constant 122 : index
    %367 = memref.load %arg3[%c122] : memref<224xf32, #tpu.memory_space<smem>>
    %368 = vector.broadcast %367 : f32 to vector<4x4xf32>
    %369 = arith.mulf %368, %350 : vector<4x4xf32>
    %370 = arith.addf %337, %369 : vector<4x4xf32>
    %c150 = arith.constant 150 : index
    %371 = memref.load %arg3[%c150] : memref<224xf32, #tpu.memory_space<smem>>
    %372 = vector.broadcast %371 : f32 to vector<4x4xf32>
    %373 = arith.mulf %372, %350 : vector<4x4xf32>
    %374 = arith.addf %341, %373 : vector<4x4xf32>
    %c178 = arith.constant 178 : index
    %375 = memref.load %arg3[%c178] : memref<224xf32, #tpu.memory_space<smem>>
    %376 = vector.broadcast %375 : f32 to vector<4x4xf32>
    %377 = arith.mulf %376, %350 : vector<4x4xf32>
    %378 = arith.addf %345, %377 : vector<4x4xf32>
    %c206 = arith.constant 206 : index
    %379 = memref.load %arg3[%c206] : memref<224xf32, #tpu.memory_space<smem>>
    %380 = vector.broadcast %379 : f32 to vector<4x4xf32>
    %381 = arith.mulf %380, %350 : vector<4x4xf32>
    %382 = arith.addf %349, %381 : vector<4x4xf32>
    %383 = vector.extract_strided_slice %250 {offsets = [0, 8], sizes = [4, 4], strides = [1, 1]} : vector<4x16xf32> to vector<4x4xf32>
    %c11 = arith.constant 11 : index
    %384 = memref.load %arg3[%c11] : memref<224xf32, #tpu.memory_space<smem>>
    %385 = vector.broadcast %384 : f32 to vector<4x4xf32>
    %386 = arith.mulf %385, %383 : vector<4x4xf32>
    %387 = arith.addf %354, %386 : vector<4x4xf32>
    %c39 = arith.constant 39 : index
    %388 = memref.load %arg3[%c39] : memref<224xf32, #tpu.memory_space<smem>>
    %389 = vector.broadcast %388 : f32 to vector<4x4xf32>
    %390 = arith.mulf %389, %383 : vector<4x4xf32>
    %391 = arith.addf %358, %390 : vector<4x4xf32>
    %c67 = arith.constant 67 : index
    %392 = memref.load %arg3[%c67] : memref<224xf32, #tpu.memory_space<smem>>
    %393 = vector.broadcast %392 : f32 to vector<4x4xf32>
    %394 = arith.mulf %393, %383 : vector<4x4xf32>
    %395 = arith.addf %362, %394 : vector<4x4xf32>
    %c95 = arith.constant 95 : index
    %396 = memref.load %arg3[%c95] : memref<224xf32, #tpu.memory_space<smem>>
    %397 = vector.broadcast %396 : f32 to vector<4x4xf32>
    %398 = arith.mulf %397, %383 : vector<4x4xf32>
    %399 = arith.addf %366, %398 : vector<4x4xf32>
    %c123 = arith.constant 123 : index
    %400 = memref.load %arg3[%c123] : memref<224xf32, #tpu.memory_space<smem>>
    %401 = vector.broadcast %400 : f32 to vector<4x4xf32>
    %402 = arith.mulf %401, %383 : vector<4x4xf32>
    %403 = arith.addf %370, %402 : vector<4x4xf32>
    %c151 = arith.constant 151 : index
    %404 = memref.load %arg3[%c151] : memref<224xf32, #tpu.memory_space<smem>>
    %405 = vector.broadcast %404 : f32 to vector<4x4xf32>
    %406 = arith.mulf %405, %383 : vector<4x4xf32>
    %407 = arith.addf %374, %406 : vector<4x4xf32>
    %c179 = arith.constant 179 : index
    %408 = memref.load %arg3[%c179] : memref<224xf32, #tpu.memory_space<smem>>
    %409 = vector.broadcast %408 : f32 to vector<4x4xf32>
    %410 = arith.mulf %409, %383 : vector<4x4xf32>
    %411 = arith.addf %378, %410 : vector<4x4xf32>
    %c207 = arith.constant 207 : index
    %412 = memref.load %arg3[%c207] : memref<224xf32, #tpu.memory_space<smem>>
    %413 = vector.broadcast %412 : f32 to vector<4x4xf32>
    %414 = arith.mulf %413, %383 : vector<4x4xf32>
    %415 = arith.addf %382, %414 : vector<4x4xf32>
    %416 = vector.extract_strided_slice %250 {offsets = [0, 10], sizes = [4, 4], strides = [1, 1]} : vector<4x16xf32> to vector<4x4xf32>
    %c12 = arith.constant 12 : index
    %417 = memref.load %arg3[%c12] : memref<224xf32, #tpu.memory_space<smem>>
    %418 = vector.broadcast %417 : f32 to vector<4x4xf32>
    %419 = arith.mulf %418, %416 : vector<4x4xf32>
    %420 = arith.addf %387, %419 : vector<4x4xf32>
    %c40 = arith.constant 40 : index
    %421 = memref.load %arg3[%c40] : memref<224xf32, #tpu.memory_space<smem>>
    %422 = vector.broadcast %421 : f32 to vector<4x4xf32>
    %423 = arith.mulf %422, %416 : vector<4x4xf32>
    %424 = arith.addf %391, %423 : vector<4x4xf32>
    %c68 = arith.constant 68 : index
    %425 = memref.load %arg3[%c68] : memref<224xf32, #tpu.memory_space<smem>>
    %426 = vector.broadcast %425 : f32 to vector<4x4xf32>
    %427 = arith.mulf %426, %416 : vector<4x4xf32>
    %428 = arith.addf %395, %427 : vector<4x4xf32>
    %c96 = arith.constant 96 : index
    %429 = memref.load %arg3[%c96] : memref<224xf32, #tpu.memory_space<smem>>
    %430 = vector.broadcast %429 : f32 to vector<4x4xf32>
    %431 = arith.mulf %430, %416 : vector<4x4xf32>
    %432 = arith.addf %399, %431 : vector<4x4xf32>
    %c124 = arith.constant 124 : index
    %433 = memref.load %arg3[%c124] : memref<224xf32, #tpu.memory_space<smem>>
    %434 = vector.broadcast %433 : f32 to vector<4x4xf32>
    %435 = arith.mulf %434, %416 : vector<4x4xf32>
    %436 = arith.addf %403, %435 : vector<4x4xf32>
    %c152 = arith.constant 152 : index
    %437 = memref.load %arg3[%c152] : memref<224xf32, #tpu.memory_space<smem>>
    %438 = vector.broadcast %437 : f32 to vector<4x4xf32>
    %439 = arith.mulf %438, %416 : vector<4x4xf32>
    %440 = arith.addf %407, %439 : vector<4x4xf32>
    %c180 = arith.constant 180 : index
    %441 = memref.load %arg3[%c180] : memref<224xf32, #tpu.memory_space<smem>>
    %442 = vector.broadcast %441 : f32 to vector<4x4xf32>
    %443 = arith.mulf %442, %416 : vector<4x4xf32>
    %444 = arith.addf %411, %443 : vector<4x4xf32>
    %c208 = arith.constant 208 : index
    %445 = memref.load %arg3[%c208] : memref<224xf32, #tpu.memory_space<smem>>
    %446 = vector.broadcast %445 : f32 to vector<4x4xf32>
    %447 = arith.mulf %446, %416 : vector<4x4xf32>
    %448 = arith.addf %415, %447 : vector<4x4xf32>
    %449 = vector.extract_strided_slice %250 {offsets = [0, 12], sizes = [4, 4], strides = [1, 1]} : vector<4x16xf32> to vector<4x4xf32>
    %c13 = arith.constant 13 : index
    %450 = memref.load %arg3[%c13] : memref<224xf32, #tpu.memory_space<smem>>
    %451 = vector.broadcast %450 : f32 to vector<4x4xf32>
    %452 = arith.mulf %451, %449 : vector<4x4xf32>
    %453 = arith.addf %420, %452 : vector<4x4xf32>
    %c41 = arith.constant 41 : index
    %454 = memref.load %arg3[%c41] : memref<224xf32, #tpu.memory_space<smem>>
    %455 = vector.broadcast %454 : f32 to vector<4x4xf32>
    %456 = arith.mulf %455, %449 : vector<4x4xf32>
    %457 = arith.addf %424, %456 : vector<4x4xf32>
    %c69 = arith.constant 69 : index
    %458 = memref.load %arg3[%c69] : memref<224xf32, #tpu.memory_space<smem>>
    %459 = vector.broadcast %458 : f32 to vector<4x4xf32>
    %460 = arith.mulf %459, %449 : vector<4x4xf32>
    %461 = arith.addf %428, %460 : vector<4x4xf32>
    %c97 = arith.constant 97 : index
    %462 = memref.load %arg3[%c97] : memref<224xf32, #tpu.memory_space<smem>>
    %463 = vector.broadcast %462 : f32 to vector<4x4xf32>
    %464 = arith.mulf %463, %449 : vector<4x4xf32>
    %465 = arith.addf %432, %464 : vector<4x4xf32>
    %c125 = arith.constant 125 : index
    %466 = memref.load %arg3[%c125] : memref<224xf32, #tpu.memory_space<smem>>
    %467 = vector.broadcast %466 : f32 to vector<4x4xf32>
    %468 = arith.mulf %467, %449 : vector<4x4xf32>
    %469 = arith.addf %436, %468 : vector<4x4xf32>
    %c153 = arith.constant 153 : index
    %470 = memref.load %arg3[%c153] : memref<224xf32, #tpu.memory_space<smem>>
    %471 = vector.broadcast %470 : f32 to vector<4x4xf32>
    %472 = arith.mulf %471, %449 : vector<4x4xf32>
    %473 = arith.addf %440, %472 : vector<4x4xf32>
    %c181 = arith.constant 181 : index
    %474 = memref.load %arg3[%c181] : memref<224xf32, #tpu.memory_space<smem>>
    %475 = vector.broadcast %474 : f32 to vector<4x4xf32>
    %476 = arith.mulf %475, %449 : vector<4x4xf32>
    %477 = arith.addf %444, %476 : vector<4x4xf32>
    %c209 = arith.constant 209 : index
    %478 = memref.load %arg3[%c209] : memref<224xf32, #tpu.memory_space<smem>>
    %479 = vector.broadcast %478 : f32 to vector<4x4xf32>
    %480 = arith.mulf %479, %449 : vector<4x4xf32>
    %481 = arith.addf %448, %480 : vector<4x4xf32>
    %c0_16 = arith.constant 0 : index
    %c2_17 = arith.constant 2 : index
    %c0_18 = arith.constant 0 : index
    %c0_19 = arith.constant 0 : index
    %482 = vector.load %arg2[%c0_16, %c2_17, %c0_18, %c0_19] : memref<1x4x4x16xf32, #tpu.memory_space<vmem>>, vector<1x1x4x16xf32>
    %483 = vector.shape_cast %482 : vector<1x1x4x16xf32> to vector<4x16xf32>
    %484 = vector.extract_strided_slice %483 {offsets = [0, 0], sizes = [4, 4], strides = [1, 1]} : vector<4x16xf32> to vector<4x4xf32>
    %c14 = arith.constant 14 : index
    %485 = memref.load %arg3[%c14] : memref<224xf32, #tpu.memory_space<smem>>
    %486 = vector.broadcast %485 : f32 to vector<4x4xf32>
    %487 = arith.mulf %486, %484 : vector<4x4xf32>
    %488 = arith.addf %453, %487 : vector<4x4xf32>
    %c42 = arith.constant 42 : index
    %489 = memref.load %arg3[%c42] : memref<224xf32, #tpu.memory_space<smem>>
    %490 = vector.broadcast %489 : f32 to vector<4x4xf32>
    %491 = arith.mulf %490, %484 : vector<4x4xf32>
    %492 = arith.addf %457, %491 : vector<4x4xf32>
    %c70 = arith.constant 70 : index
    %493 = memref.load %arg3[%c70] : memref<224xf32, #tpu.memory_space<smem>>
    %494 = vector.broadcast %493 : f32 to vector<4x4xf32>
    %495 = arith.mulf %494, %484 : vector<4x4xf32>
    %496 = arith.addf %461, %495 : vector<4x4xf32>
    %c98 = arith.constant 98 : index
    %497 = memref.load %arg3[%c98] : memref<224xf32, #tpu.memory_space<smem>>
    %498 = vector.broadcast %497 : f32 to vector<4x4xf32>
    %499 = arith.mulf %498, %484 : vector<4x4xf32>
    %500 = arith.addf %465, %499 : vector<4x4xf32>
    %c126 = arith.constant 126 : index
    %501 = memref.load %arg3[%c126] : memref<224xf32, #tpu.memory_space<smem>>
    %502 = vector.broadcast %501 : f32 to vector<4x4xf32>
    %503 = arith.mulf %502, %484 : vector<4x4xf32>
    %504 = arith.addf %469, %503 : vector<4x4xf32>
    %c154 = arith.constant 154 : index
    %505 = memref.load %arg3[%c154] : memref<224xf32, #tpu.memory_space<smem>>
    %506 = vector.broadcast %505 : f32 to vector<4x4xf32>
    %507 = arith.mulf %506, %484 : vector<4x4xf32>
    %508 = arith.addf %473, %507 : vector<4x4xf32>
    %c182 = arith.constant 182 : index
    %509 = memref.load %arg3[%c182] : memref<224xf32, #tpu.memory_space<smem>>
    %510 = vector.broadcast %509 : f32 to vector<4x4xf32>
    %511 = arith.mulf %510, %484 : vector<4x4xf32>
    %512 = arith.addf %477, %511 : vector<4x4xf32>
    %c210 = arith.constant 210 : index
    %513 = memref.load %arg3[%c210] : memref<224xf32, #tpu.memory_space<smem>>
    %514 = vector.broadcast %513 : f32 to vector<4x4xf32>
    %515 = arith.mulf %514, %484 : vector<4x4xf32>
    %516 = arith.addf %481, %515 : vector<4x4xf32>
    %517 = vector.extract_strided_slice %483 {offsets = [0, 2], sizes = [4, 4], strides = [1, 1]} : vector<4x16xf32> to vector<4x4xf32>
    %c15 = arith.constant 15 : index
    %518 = memref.load %arg3[%c15] : memref<224xf32, #tpu.memory_space<smem>>
    %519 = vector.broadcast %518 : f32 to vector<4x4xf32>
    %520 = arith.mulf %519, %517 : vector<4x4xf32>
    %521 = arith.addf %488, %520 : vector<4x4xf32>
    %c43 = arith.constant 43 : index
    %522 = memref.load %arg3[%c43] : memref<224xf32, #tpu.memory_space<smem>>
    %523 = vector.broadcast %522 : f32 to vector<4x4xf32>
    %524 = arith.mulf %523, %517 : vector<4x4xf32>
    %525 = arith.addf %492, %524 : vector<4x4xf32>
    %c71 = arith.constant 71 : index
    %526 = memref.load %arg3[%c71] : memref<224xf32, #tpu.memory_space<smem>>
    %527 = vector.broadcast %526 : f32 to vector<4x4xf32>
    %528 = arith.mulf %527, %517 : vector<4x4xf32>
    %529 = arith.addf %496, %528 : vector<4x4xf32>
    %c99 = arith.constant 99 : index
    %530 = memref.load %arg3[%c99] : memref<224xf32, #tpu.memory_space<smem>>
    %531 = vector.broadcast %530 : f32 to vector<4x4xf32>
    %532 = arith.mulf %531, %517 : vector<4x4xf32>
    %533 = arith.addf %500, %532 : vector<4x4xf32>
    %c127 = arith.constant 127 : index
    %534 = memref.load %arg3[%c127] : memref<224xf32, #tpu.memory_space<smem>>
    %535 = vector.broadcast %534 : f32 to vector<4x4xf32>
    %536 = arith.mulf %535, %517 : vector<4x4xf32>
    %537 = arith.addf %504, %536 : vector<4x4xf32>
    %c155 = arith.constant 155 : index
    %538 = memref.load %arg3[%c155] : memref<224xf32, #tpu.memory_space<smem>>
    %539 = vector.broadcast %538 : f32 to vector<4x4xf32>
    %540 = arith.mulf %539, %517 : vector<4x4xf32>
    %541 = arith.addf %508, %540 : vector<4x4xf32>
    %c183 = arith.constant 183 : index
    %542 = memref.load %arg3[%c183] : memref<224xf32, #tpu.memory_space<smem>>
    %543 = vector.broadcast %542 : f32 to vector<4x4xf32>
    %544 = arith.mulf %543, %517 : vector<4x4xf32>
    %545 = arith.addf %512, %544 : vector<4x4xf32>
    %c211 = arith.constant 211 : index
    %546 = memref.load %arg3[%c211] : memref<224xf32, #tpu.memory_space<smem>>
    %547 = vector.broadcast %546 : f32 to vector<4x4xf32>
    %548 = arith.mulf %547, %517 : vector<4x4xf32>
    %549 = arith.addf %516, %548 : vector<4x4xf32>
    %550 = vector.extract_strided_slice %483 {offsets = [0, 4], sizes = [4, 4], strides = [1, 1]} : vector<4x16xf32> to vector<4x4xf32>
    %c16 = arith.constant 16 : index
    %551 = memref.load %arg3[%c16] : memref<224xf32, #tpu.memory_space<smem>>
    %552 = vector.broadcast %551 : f32 to vector<4x4xf32>
    %553 = arith.mulf %552, %550 : vector<4x4xf32>
    %554 = arith.addf %521, %553 : vector<4x4xf32>
    %c44 = arith.constant 44 : index
    %555 = memref.load %arg3[%c44] : memref<224xf32, #tpu.memory_space<smem>>
    %556 = vector.broadcast %555 : f32 to vector<4x4xf32>
    %557 = arith.mulf %556, %550 : vector<4x4xf32>
    %558 = arith.addf %525, %557 : vector<4x4xf32>
    %c72 = arith.constant 72 : index
    %559 = memref.load %arg3[%c72] : memref<224xf32, #tpu.memory_space<smem>>
    %560 = vector.broadcast %559 : f32 to vector<4x4xf32>
    %561 = arith.mulf %560, %550 : vector<4x4xf32>
    %562 = arith.addf %529, %561 : vector<4x4xf32>
    %c100 = arith.constant 100 : index
    %563 = memref.load %arg3[%c100] : memref<224xf32, #tpu.memory_space<smem>>
    %564 = vector.broadcast %563 : f32 to vector<4x4xf32>
    %565 = arith.mulf %564, %550 : vector<4x4xf32>
    %566 = arith.addf %533, %565 : vector<4x4xf32>
    %c128 = arith.constant 128 : index
    %567 = memref.load %arg3[%c128] : memref<224xf32, #tpu.memory_space<smem>>
    %568 = vector.broadcast %567 : f32 to vector<4x4xf32>
    %569 = arith.mulf %568, %550 : vector<4x4xf32>
    %570 = arith.addf %537, %569 : vector<4x4xf32>
    %c156 = arith.constant 156 : index
    %571 = memref.load %arg3[%c156] : memref<224xf32, #tpu.memory_space<smem>>
    %572 = vector.broadcast %571 : f32 to vector<4x4xf32>
    %573 = arith.mulf %572, %550 : vector<4x4xf32>
    %574 = arith.addf %541, %573 : vector<4x4xf32>
    %c184 = arith.constant 184 : index
    %575 = memref.load %arg3[%c184] : memref<224xf32, #tpu.memory_space<smem>>
    %576 = vector.broadcast %575 : f32 to vector<4x4xf32>
    %577 = arith.mulf %576, %550 : vector<4x4xf32>
    %578 = arith.addf %545, %577 : vector<4x4xf32>
    %c212 = arith.constant 212 : index
    %579 = memref.load %arg3[%c212] : memref<224xf32, #tpu.memory_space<smem>>
    %580 = vector.broadcast %579 : f32 to vector<4x4xf32>
    %581 = arith.mulf %580, %550 : vector<4x4xf32>
    %582 = arith.addf %549, %581 : vector<4x4xf32>
    %583 = vector.extract_strided_slice %483 {offsets = [0, 6], sizes = [4, 4], strides = [1, 1]} : vector<4x16xf32> to vector<4x4xf32>
    %c17 = arith.constant 17 : index
    %584 = memref.load %arg3[%c17] : memref<224xf32, #tpu.memory_space<smem>>
    %585 = vector.broadcast %584 : f32 to vector<4x4xf32>
    %586 = arith.mulf %585, %583 : vector<4x4xf32>
    %587 = arith.addf %554, %586 : vector<4x4xf32>
    %c45 = arith.constant 45 : index
    %588 = memref.load %arg3[%c45] : memref<224xf32, #tpu.memory_space<smem>>
    %589 = vector.broadcast %588 : f32 to vector<4x4xf32>
    %590 = arith.mulf %589, %583 : vector<4x4xf32>
    %591 = arith.addf %558, %590 : vector<4x4xf32>
    %c73 = arith.constant 73 : index
    %592 = memref.load %arg3[%c73] : memref<224xf32, #tpu.memory_space<smem>>
    %593 = vector.broadcast %592 : f32 to vector<4x4xf32>
    %594 = arith.mulf %593, %583 : vector<4x4xf32>
    %595 = arith.addf %562, %594 : vector<4x4xf32>
    %c101 = arith.constant 101 : index
    %596 = memref.load %arg3[%c101] : memref<224xf32, #tpu.memory_space<smem>>
    %597 = vector.broadcast %596 : f32 to vector<4x4xf32>
    %598 = arith.mulf %597, %583 : vector<4x4xf32>
    %599 = arith.addf %566, %598 : vector<4x4xf32>
    %c129 = arith.constant 129 : index
    %600 = memref.load %arg3[%c129] : memref<224xf32, #tpu.memory_space<smem>>
    %601 = vector.broadcast %600 : f32 to vector<4x4xf32>
    %602 = arith.mulf %601, %583 : vector<4x4xf32>
    %603 = arith.addf %570, %602 : vector<4x4xf32>
    %c157 = arith.constant 157 : index
    %604 = memref.load %arg3[%c157] : memref<224xf32, #tpu.memory_space<smem>>
    %605 = vector.broadcast %604 : f32 to vector<4x4xf32>
    %606 = arith.mulf %605, %583 : vector<4x4xf32>
    %607 = arith.addf %574, %606 : vector<4x4xf32>
    %c185 = arith.constant 185 : index
    %608 = memref.load %arg3[%c185] : memref<224xf32, #tpu.memory_space<smem>>
    %609 = vector.broadcast %608 : f32 to vector<4x4xf32>
    %610 = arith.mulf %609, %583 : vector<4x4xf32>
    %611 = arith.addf %578, %610 : vector<4x4xf32>
    %c213 = arith.constant 213 : index
    %612 = memref.load %arg3[%c213] : memref<224xf32, #tpu.memory_space<smem>>
    %613 = vector.broadcast %612 : f32 to vector<4x4xf32>
    %614 = arith.mulf %613, %583 : vector<4x4xf32>
    %615 = arith.addf %582, %614 : vector<4x4xf32>
    %616 = vector.extract_strided_slice %483 {offsets = [0, 8], sizes = [4, 4], strides = [1, 1]} : vector<4x16xf32> to vector<4x4xf32>
    %c18 = arith.constant 18 : index
    %617 = memref.load %arg3[%c18] : memref<224xf32, #tpu.memory_space<smem>>
    %618 = vector.broadcast %617 : f32 to vector<4x4xf32>
    %619 = arith.mulf %618, %616 : vector<4x4xf32>
    %620 = arith.addf %587, %619 : vector<4x4xf32>
    %c46 = arith.constant 46 : index
    %621 = memref.load %arg3[%c46] : memref<224xf32, #tpu.memory_space<smem>>
    %622 = vector.broadcast %621 : f32 to vector<4x4xf32>
    %623 = arith.mulf %622, %616 : vector<4x4xf32>
    %624 = arith.addf %591, %623 : vector<4x4xf32>
    %c74 = arith.constant 74 : index
    %625 = memref.load %arg3[%c74] : memref<224xf32, #tpu.memory_space<smem>>
    %626 = vector.broadcast %625 : f32 to vector<4x4xf32>
    %627 = arith.mulf %626, %616 : vector<4x4xf32>
    %628 = arith.addf %595, %627 : vector<4x4xf32>
    %c102 = arith.constant 102 : index
    %629 = memref.load %arg3[%c102] : memref<224xf32, #tpu.memory_space<smem>>
    %630 = vector.broadcast %629 : f32 to vector<4x4xf32>
    %631 = arith.mulf %630, %616 : vector<4x4xf32>
    %632 = arith.addf %599, %631 : vector<4x4xf32>
    %c130 = arith.constant 130 : index
    %633 = memref.load %arg3[%c130] : memref<224xf32, #tpu.memory_space<smem>>
    %634 = vector.broadcast %633 : f32 to vector<4x4xf32>
    %635 = arith.mulf %634, %616 : vector<4x4xf32>
    %636 = arith.addf %603, %635 : vector<4x4xf32>
    %c158 = arith.constant 158 : index
    %637 = memref.load %arg3[%c158] : memref<224xf32, #tpu.memory_space<smem>>
    %638 = vector.broadcast %637 : f32 to vector<4x4xf32>
    %639 = arith.mulf %638, %616 : vector<4x4xf32>
    %640 = arith.addf %607, %639 : vector<4x4xf32>
    %c186 = arith.constant 186 : index
    %641 = memref.load %arg3[%c186] : memref<224xf32, #tpu.memory_space<smem>>
    %642 = vector.broadcast %641 : f32 to vector<4x4xf32>
    %643 = arith.mulf %642, %616 : vector<4x4xf32>
    %644 = arith.addf %611, %643 : vector<4x4xf32>
    %c214 = arith.constant 214 : index
    %645 = memref.load %arg3[%c214] : memref<224xf32, #tpu.memory_space<smem>>
    %646 = vector.broadcast %645 : f32 to vector<4x4xf32>
    %647 = arith.mulf %646, %616 : vector<4x4xf32>
    %648 = arith.addf %615, %647 : vector<4x4xf32>
    %649 = vector.extract_strided_slice %483 {offsets = [0, 10], sizes = [4, 4], strides = [1, 1]} : vector<4x16xf32> to vector<4x4xf32>
    %c19 = arith.constant 19 : index
    %650 = memref.load %arg3[%c19] : memref<224xf32, #tpu.memory_space<smem>>
    %651 = vector.broadcast %650 : f32 to vector<4x4xf32>
    %652 = arith.mulf %651, %649 : vector<4x4xf32>
    %653 = arith.addf %620, %652 : vector<4x4xf32>
    %c47 = arith.constant 47 : index
    %654 = memref.load %arg3[%c47] : memref<224xf32, #tpu.memory_space<smem>>
    %655 = vector.broadcast %654 : f32 to vector<4x4xf32>
    %656 = arith.mulf %655, %649 : vector<4x4xf32>
    %657 = arith.addf %624, %656 : vector<4x4xf32>
    %c75 = arith.constant 75 : index
    %658 = memref.load %arg3[%c75] : memref<224xf32, #tpu.memory_space<smem>>
    %659 = vector.broadcast %658 : f32 to vector<4x4xf32>
    %660 = arith.mulf %659, %649 : vector<4x4xf32>
    %661 = arith.addf %628, %660 : vector<4x4xf32>
    %c103 = arith.constant 103 : index
    %662 = memref.load %arg3[%c103] : memref<224xf32, #tpu.memory_space<smem>>
    %663 = vector.broadcast %662 : f32 to vector<4x4xf32>
    %664 = arith.mulf %663, %649 : vector<4x4xf32>
    %665 = arith.addf %632, %664 : vector<4x4xf32>
    %c131 = arith.constant 131 : index
    %666 = memref.load %arg3[%c131] : memref<224xf32, #tpu.memory_space<smem>>
    %667 = vector.broadcast %666 : f32 to vector<4x4xf32>
    %668 = arith.mulf %667, %649 : vector<4x4xf32>
    %669 = arith.addf %636, %668 : vector<4x4xf32>
    %c159 = arith.constant 159 : index
    %670 = memref.load %arg3[%c159] : memref<224xf32, #tpu.memory_space<smem>>
    %671 = vector.broadcast %670 : f32 to vector<4x4xf32>
    %672 = arith.mulf %671, %649 : vector<4x4xf32>
    %673 = arith.addf %640, %672 : vector<4x4xf32>
    %c187 = arith.constant 187 : index
    %674 = memref.load %arg3[%c187] : memref<224xf32, #tpu.memory_space<smem>>
    %675 = vector.broadcast %674 : f32 to vector<4x4xf32>
    %676 = arith.mulf %675, %649 : vector<4x4xf32>
    %677 = arith.addf %644, %676 : vector<4x4xf32>
    %c215 = arith.constant 215 : index
    %678 = memref.load %arg3[%c215] : memref<224xf32, #tpu.memory_space<smem>>
    %679 = vector.broadcast %678 : f32 to vector<4x4xf32>
    %680 = arith.mulf %679, %649 : vector<4x4xf32>
    %681 = arith.addf %648, %680 : vector<4x4xf32>
    %682 = vector.extract_strided_slice %483 {offsets = [0, 12], sizes = [4, 4], strides = [1, 1]} : vector<4x16xf32> to vector<4x4xf32>
    %c20 = arith.constant 20 : index
    %683 = memref.load %arg3[%c20] : memref<224xf32, #tpu.memory_space<smem>>
    %684 = vector.broadcast %683 : f32 to vector<4x4xf32>
    %685 = arith.mulf %684, %682 : vector<4x4xf32>
    %686 = arith.addf %653, %685 : vector<4x4xf32>
    %c48 = arith.constant 48 : index
    %687 = memref.load %arg3[%c48] : memref<224xf32, #tpu.memory_space<smem>>
    %688 = vector.broadcast %687 : f32 to vector<4x4xf32>
    %689 = arith.mulf %688, %682 : vector<4x4xf32>
    %690 = arith.addf %657, %689 : vector<4x4xf32>
    %c76 = arith.constant 76 : index
    %691 = memref.load %arg3[%c76] : memref<224xf32, #tpu.memory_space<smem>>
    %692 = vector.broadcast %691 : f32 to vector<4x4xf32>
    %693 = arith.mulf %692, %682 : vector<4x4xf32>
    %694 = arith.addf %661, %693 : vector<4x4xf32>
    %c104 = arith.constant 104 : index
    %695 = memref.load %arg3[%c104] : memref<224xf32, #tpu.memory_space<smem>>
    %696 = vector.broadcast %695 : f32 to vector<4x4xf32>
    %697 = arith.mulf %696, %682 : vector<4x4xf32>
    %698 = arith.addf %665, %697 : vector<4x4xf32>
    %c132 = arith.constant 132 : index
    %699 = memref.load %arg3[%c132] : memref<224xf32, #tpu.memory_space<smem>>
    %700 = vector.broadcast %699 : f32 to vector<4x4xf32>
    %701 = arith.mulf %700, %682 : vector<4x4xf32>
    %702 = arith.addf %669, %701 : vector<4x4xf32>
    %c160 = arith.constant 160 : index
    %703 = memref.load %arg3[%c160] : memref<224xf32, #tpu.memory_space<smem>>
    %704 = vector.broadcast %703 : f32 to vector<4x4xf32>
    %705 = arith.mulf %704, %682 : vector<4x4xf32>
    %706 = arith.addf %673, %705 : vector<4x4xf32>
    %c188 = arith.constant 188 : index
    %707 = memref.load %arg3[%c188] : memref<224xf32, #tpu.memory_space<smem>>
    %708 = vector.broadcast %707 : f32 to vector<4x4xf32>
    %709 = arith.mulf %708, %682 : vector<4x4xf32>
    %710 = arith.addf %677, %709 : vector<4x4xf32>
    %c216 = arith.constant 216 : index
    %711 = memref.load %arg3[%c216] : memref<224xf32, #tpu.memory_space<smem>>
    %712 = vector.broadcast %711 : f32 to vector<4x4xf32>
    %713 = arith.mulf %712, %682 : vector<4x4xf32>
    %714 = arith.addf %681, %713 : vector<4x4xf32>
    %c0_20 = arith.constant 0 : index
    %c3_21 = arith.constant 3 : index
    %c0_22 = arith.constant 0 : index
    %c0_23 = arith.constant 0 : index
    %715 = vector.load %arg2[%c0_20, %c3_21, %c0_22, %c0_23] : memref<1x4x4x16xf32, #tpu.memory_space<vmem>>, vector<1x1x4x16xf32>
    %716 = vector.shape_cast %715 : vector<1x1x4x16xf32> to vector<4x16xf32>
    %717 = vector.extract_strided_slice %716 {offsets = [0, 0], sizes = [4, 4], strides = [1, 1]} : vector<4x16xf32> to vector<4x4xf32>
    %c21 = arith.constant 21 : index
    %718 = memref.load %arg3[%c21] : memref<224xf32, #tpu.memory_space<smem>>
    %719 = vector.broadcast %718 : f32 to vector<4x4xf32>
    %720 = arith.mulf %719, %717 : vector<4x4xf32>
    %721 = arith.addf %686, %720 : vector<4x4xf32>
    %c49 = arith.constant 49 : index
    %722 = memref.load %arg3[%c49] : memref<224xf32, #tpu.memory_space<smem>>
    %723 = vector.broadcast %722 : f32 to vector<4x4xf32>
    %724 = arith.mulf %723, %717 : vector<4x4xf32>
    %725 = arith.addf %690, %724 : vector<4x4xf32>
    %c77 = arith.constant 77 : index
    %726 = memref.load %arg3[%c77] : memref<224xf32, #tpu.memory_space<smem>>
    %727 = vector.broadcast %726 : f32 to vector<4x4xf32>
    %728 = arith.mulf %727, %717 : vector<4x4xf32>
    %729 = arith.addf %694, %728 : vector<4x4xf32>
    %c105 = arith.constant 105 : index
    %730 = memref.load %arg3[%c105] : memref<224xf32, #tpu.memory_space<smem>>
    %731 = vector.broadcast %730 : f32 to vector<4x4xf32>
    %732 = arith.mulf %731, %717 : vector<4x4xf32>
    %733 = arith.addf %698, %732 : vector<4x4xf32>
    %c133 = arith.constant 133 : index
    %734 = memref.load %arg3[%c133] : memref<224xf32, #tpu.memory_space<smem>>
    %735 = vector.broadcast %734 : f32 to vector<4x4xf32>
    %736 = arith.mulf %735, %717 : vector<4x4xf32>
    %737 = arith.addf %702, %736 : vector<4x4xf32>
    %c161 = arith.constant 161 : index
    %738 = memref.load %arg3[%c161] : memref<224xf32, #tpu.memory_space<smem>>
    %739 = vector.broadcast %738 : f32 to vector<4x4xf32>
    %740 = arith.mulf %739, %717 : vector<4x4xf32>
    %741 = arith.addf %706, %740 : vector<4x4xf32>
    %c189 = arith.constant 189 : index
    %742 = memref.load %arg3[%c189] : memref<224xf32, #tpu.memory_space<smem>>
    %743 = vector.broadcast %742 : f32 to vector<4x4xf32>
    %744 = arith.mulf %743, %717 : vector<4x4xf32>
    %745 = arith.addf %710, %744 : vector<4x4xf32>
    %c217 = arith.constant 217 : index
    %746 = memref.load %arg3[%c217] : memref<224xf32, #tpu.memory_space<smem>>
    %747 = vector.broadcast %746 : f32 to vector<4x4xf32>
    %748 = arith.mulf %747, %717 : vector<4x4xf32>
    %749 = arith.addf %714, %748 : vector<4x4xf32>
    %750 = vector.extract_strided_slice %716 {offsets = [0, 2], sizes = [4, 4], strides = [1, 1]} : vector<4x16xf32> to vector<4x4xf32>
    %c22 = arith.constant 22 : index
    %751 = memref.load %arg3[%c22] : memref<224xf32, #tpu.memory_space<smem>>
    %752 = vector.broadcast %751 : f32 to vector<4x4xf32>
    %753 = arith.mulf %752, %750 : vector<4x4xf32>
    %754 = arith.addf %721, %753 : vector<4x4xf32>
    %c50 = arith.constant 50 : index
    %755 = memref.load %arg3[%c50] : memref<224xf32, #tpu.memory_space<smem>>
    %756 = vector.broadcast %755 : f32 to vector<4x4xf32>
    %757 = arith.mulf %756, %750 : vector<4x4xf32>
    %758 = arith.addf %725, %757 : vector<4x4xf32>
    %c78 = arith.constant 78 : index
    %759 = memref.load %arg3[%c78] : memref<224xf32, #tpu.memory_space<smem>>
    %760 = vector.broadcast %759 : f32 to vector<4x4xf32>
    %761 = arith.mulf %760, %750 : vector<4x4xf32>
    %762 = arith.addf %729, %761 : vector<4x4xf32>
    %c106 = arith.constant 106 : index
    %763 = memref.load %arg3[%c106] : memref<224xf32, #tpu.memory_space<smem>>
    %764 = vector.broadcast %763 : f32 to vector<4x4xf32>
    %765 = arith.mulf %764, %750 : vector<4x4xf32>
    %766 = arith.addf %733, %765 : vector<4x4xf32>
    %c134 = arith.constant 134 : index
    %767 = memref.load %arg3[%c134] : memref<224xf32, #tpu.memory_space<smem>>
    %768 = vector.broadcast %767 : f32 to vector<4x4xf32>
    %769 = arith.mulf %768, %750 : vector<4x4xf32>
    %770 = arith.addf %737, %769 : vector<4x4xf32>
    %c162 = arith.constant 162 : index
    %771 = memref.load %arg3[%c162] : memref<224xf32, #tpu.memory_space<smem>>
    %772 = vector.broadcast %771 : f32 to vector<4x4xf32>
    %773 = arith.mulf %772, %750 : vector<4x4xf32>
    %774 = arith.addf %741, %773 : vector<4x4xf32>
    %c190 = arith.constant 190 : index
    %775 = memref.load %arg3[%c190] : memref<224xf32, #tpu.memory_space<smem>>
    %776 = vector.broadcast %775 : f32 to vector<4x4xf32>
    %777 = arith.mulf %776, %750 : vector<4x4xf32>
    %778 = arith.addf %745, %777 : vector<4x4xf32>
    %c218 = arith.constant 218 : index
    %779 = memref.load %arg3[%c218] : memref<224xf32, #tpu.memory_space<smem>>
    %780 = vector.broadcast %779 : f32 to vector<4x4xf32>
    %781 = arith.mulf %780, %750 : vector<4x4xf32>
    %782 = arith.addf %749, %781 : vector<4x4xf32>
    %783 = vector.extract_strided_slice %716 {offsets = [0, 4], sizes = [4, 4], strides = [1, 1]} : vector<4x16xf32> to vector<4x4xf32>
    %c23 = arith.constant 23 : index
    %784 = memref.load %arg3[%c23] : memref<224xf32, #tpu.memory_space<smem>>
    %785 = vector.broadcast %784 : f32 to vector<4x4xf32>
    %786 = arith.mulf %785, %783 : vector<4x4xf32>
    %787 = arith.addf %754, %786 : vector<4x4xf32>
    %c51 = arith.constant 51 : index
    %788 = memref.load %arg3[%c51] : memref<224xf32, #tpu.memory_space<smem>>
    %789 = vector.broadcast %788 : f32 to vector<4x4xf32>
    %790 = arith.mulf %789, %783 : vector<4x4xf32>
    %791 = arith.addf %758, %790 : vector<4x4xf32>
    %c79 = arith.constant 79 : index
    %792 = memref.load %arg3[%c79] : memref<224xf32, #tpu.memory_space<smem>>
    %793 = vector.broadcast %792 : f32 to vector<4x4xf32>
    %794 = arith.mulf %793, %783 : vector<4x4xf32>
    %795 = arith.addf %762, %794 : vector<4x4xf32>
    %c107 = arith.constant 107 : index
    %796 = memref.load %arg3[%c107] : memref<224xf32, #tpu.memory_space<smem>>
    %797 = vector.broadcast %796 : f32 to vector<4x4xf32>
    %798 = arith.mulf %797, %783 : vector<4x4xf32>
    %799 = arith.addf %766, %798 : vector<4x4xf32>
    %c135 = arith.constant 135 : index
    %800 = memref.load %arg3[%c135] : memref<224xf32, #tpu.memory_space<smem>>
    %801 = vector.broadcast %800 : f32 to vector<4x4xf32>
    %802 = arith.mulf %801, %783 : vector<4x4xf32>
    %803 = arith.addf %770, %802 : vector<4x4xf32>
    %c163 = arith.constant 163 : index
    %804 = memref.load %arg3[%c163] : memref<224xf32, #tpu.memory_space<smem>>
    %805 = vector.broadcast %804 : f32 to vector<4x4xf32>
    %806 = arith.mulf %805, %783 : vector<4x4xf32>
    %807 = arith.addf %774, %806 : vector<4x4xf32>
    %c191 = arith.constant 191 : index
    %808 = memref.load %arg3[%c191] : memref<224xf32, #tpu.memory_space<smem>>
    %809 = vector.broadcast %808 : f32 to vector<4x4xf32>
    %810 = arith.mulf %809, %783 : vector<4x4xf32>
    %811 = arith.addf %778, %810 : vector<4x4xf32>
    %c219 = arith.constant 219 : index
    %812 = memref.load %arg3[%c219] : memref<224xf32, #tpu.memory_space<smem>>
    %813 = vector.broadcast %812 : f32 to vector<4x4xf32>
    %814 = arith.mulf %813, %783 : vector<4x4xf32>
    %815 = arith.addf %782, %814 : vector<4x4xf32>
    %816 = vector.extract_strided_slice %716 {offsets = [0, 6], sizes = [4, 4], strides = [1, 1]} : vector<4x16xf32> to vector<4x4xf32>
    %c24 = arith.constant 24 : index
    %817 = memref.load %arg3[%c24] : memref<224xf32, #tpu.memory_space<smem>>
    %818 = vector.broadcast %817 : f32 to vector<4x4xf32>
    %819 = arith.mulf %818, %816 : vector<4x4xf32>
    %820 = arith.addf %787, %819 : vector<4x4xf32>
    %c52 = arith.constant 52 : index
    %821 = memref.load %arg3[%c52] : memref<224xf32, #tpu.memory_space<smem>>
    %822 = vector.broadcast %821 : f32 to vector<4x4xf32>
    %823 = arith.mulf %822, %816 : vector<4x4xf32>
    %824 = arith.addf %791, %823 : vector<4x4xf32>
    %c80 = arith.constant 80 : index
    %825 = memref.load %arg3[%c80] : memref<224xf32, #tpu.memory_space<smem>>
    %826 = vector.broadcast %825 : f32 to vector<4x4xf32>
    %827 = arith.mulf %826, %816 : vector<4x4xf32>
    %828 = arith.addf %795, %827 : vector<4x4xf32>
    %c108 = arith.constant 108 : index
    %829 = memref.load %arg3[%c108] : memref<224xf32, #tpu.memory_space<smem>>
    %830 = vector.broadcast %829 : f32 to vector<4x4xf32>
    %831 = arith.mulf %830, %816 : vector<4x4xf32>
    %832 = arith.addf %799, %831 : vector<4x4xf32>
    %c136 = arith.constant 136 : index
    %833 = memref.load %arg3[%c136] : memref<224xf32, #tpu.memory_space<smem>>
    %834 = vector.broadcast %833 : f32 to vector<4x4xf32>
    %835 = arith.mulf %834, %816 : vector<4x4xf32>
    %836 = arith.addf %803, %835 : vector<4x4xf32>
    %c164 = arith.constant 164 : index
    %837 = memref.load %arg3[%c164] : memref<224xf32, #tpu.memory_space<smem>>
    %838 = vector.broadcast %837 : f32 to vector<4x4xf32>
    %839 = arith.mulf %838, %816 : vector<4x4xf32>
    %840 = arith.addf %807, %839 : vector<4x4xf32>
    %c192 = arith.constant 192 : index
    %841 = memref.load %arg3[%c192] : memref<224xf32, #tpu.memory_space<smem>>
    %842 = vector.broadcast %841 : f32 to vector<4x4xf32>
    %843 = arith.mulf %842, %816 : vector<4x4xf32>
    %844 = arith.addf %811, %843 : vector<4x4xf32>
    %c220 = arith.constant 220 : index
    %845 = memref.load %arg3[%c220] : memref<224xf32, #tpu.memory_space<smem>>
    %846 = vector.broadcast %845 : f32 to vector<4x4xf32>
    %847 = arith.mulf %846, %816 : vector<4x4xf32>
    %848 = arith.addf %815, %847 : vector<4x4xf32>
    %849 = vector.extract_strided_slice %716 {offsets = [0, 8], sizes = [4, 4], strides = [1, 1]} : vector<4x16xf32> to vector<4x4xf32>
    %c25 = arith.constant 25 : index
    %850 = memref.load %arg3[%c25] : memref<224xf32, #tpu.memory_space<smem>>
    %851 = vector.broadcast %850 : f32 to vector<4x4xf32>
    %852 = arith.mulf %851, %849 : vector<4x4xf32>
    %853 = arith.addf %820, %852 : vector<4x4xf32>
    %c53 = arith.constant 53 : index
    %854 = memref.load %arg3[%c53] : memref<224xf32, #tpu.memory_space<smem>>
    %855 = vector.broadcast %854 : f32 to vector<4x4xf32>
    %856 = arith.mulf %855, %849 : vector<4x4xf32>
    %857 = arith.addf %824, %856 : vector<4x4xf32>
    %c81 = arith.constant 81 : index
    %858 = memref.load %arg3[%c81] : memref<224xf32, #tpu.memory_space<smem>>
    %859 = vector.broadcast %858 : f32 to vector<4x4xf32>
    %860 = arith.mulf %859, %849 : vector<4x4xf32>
    %861 = arith.addf %828, %860 : vector<4x4xf32>
    %c109 = arith.constant 109 : index
    %862 = memref.load %arg3[%c109] : memref<224xf32, #tpu.memory_space<smem>>
    %863 = vector.broadcast %862 : f32 to vector<4x4xf32>
    %864 = arith.mulf %863, %849 : vector<4x4xf32>
    %865 = arith.addf %832, %864 : vector<4x4xf32>
    %c137 = arith.constant 137 : index
    %866 = memref.load %arg3[%c137] : memref<224xf32, #tpu.memory_space<smem>>
    %867 = vector.broadcast %866 : f32 to vector<4x4xf32>
    %868 = arith.mulf %867, %849 : vector<4x4xf32>
    %869 = arith.addf %836, %868 : vector<4x4xf32>
    %c165 = arith.constant 165 : index
    %870 = memref.load %arg3[%c165] : memref<224xf32, #tpu.memory_space<smem>>
    %871 = vector.broadcast %870 : f32 to vector<4x4xf32>
    %872 = arith.mulf %871, %849 : vector<4x4xf32>
    %873 = arith.addf %840, %872 : vector<4x4xf32>
    %c193 = arith.constant 193 : index
    %874 = memref.load %arg3[%c193] : memref<224xf32, #tpu.memory_space<smem>>
    %875 = vector.broadcast %874 : f32 to vector<4x4xf32>
    %876 = arith.mulf %875, %849 : vector<4x4xf32>
    %877 = arith.addf %844, %876 : vector<4x4xf32>
    %c221 = arith.constant 221 : index
    %878 = memref.load %arg3[%c221] : memref<224xf32, #tpu.memory_space<smem>>
    %879 = vector.broadcast %878 : f32 to vector<4x4xf32>
    %880 = arith.mulf %879, %849 : vector<4x4xf32>
    %881 = arith.addf %848, %880 : vector<4x4xf32>
    %882 = vector.extract_strided_slice %716 {offsets = [0, 10], sizes = [4, 4], strides = [1, 1]} : vector<4x16xf32> to vector<4x4xf32>
    %c26 = arith.constant 26 : index
    %883 = memref.load %arg3[%c26] : memref<224xf32, #tpu.memory_space<smem>>
    %884 = vector.broadcast %883 : f32 to vector<4x4xf32>
    %885 = arith.mulf %884, %882 : vector<4x4xf32>
    %886 = arith.addf %853, %885 : vector<4x4xf32>
    %c54 = arith.constant 54 : index
    %887 = memref.load %arg3[%c54] : memref<224xf32, #tpu.memory_space<smem>>
    %888 = vector.broadcast %887 : f32 to vector<4x4xf32>
    %889 = arith.mulf %888, %882 : vector<4x4xf32>
    %890 = arith.addf %857, %889 : vector<4x4xf32>
    %c82 = arith.constant 82 : index
    %891 = memref.load %arg3[%c82] : memref<224xf32, #tpu.memory_space<smem>>
    %892 = vector.broadcast %891 : f32 to vector<4x4xf32>
    %893 = arith.mulf %892, %882 : vector<4x4xf32>
    %894 = arith.addf %861, %893 : vector<4x4xf32>
    %c110 = arith.constant 110 : index
    %895 = memref.load %arg3[%c110] : memref<224xf32, #tpu.memory_space<smem>>
    %896 = vector.broadcast %895 : f32 to vector<4x4xf32>
    %897 = arith.mulf %896, %882 : vector<4x4xf32>
    %898 = arith.addf %865, %897 : vector<4x4xf32>
    %c138 = arith.constant 138 : index
    %899 = memref.load %arg3[%c138] : memref<224xf32, #tpu.memory_space<smem>>
    %900 = vector.broadcast %899 : f32 to vector<4x4xf32>
    %901 = arith.mulf %900, %882 : vector<4x4xf32>
    %902 = arith.addf %869, %901 : vector<4x4xf32>
    %c166 = arith.constant 166 : index
    %903 = memref.load %arg3[%c166] : memref<224xf32, #tpu.memory_space<smem>>
    %904 = vector.broadcast %903 : f32 to vector<4x4xf32>
    %905 = arith.mulf %904, %882 : vector<4x4xf32>
    %906 = arith.addf %873, %905 : vector<4x4xf32>
    %c194 = arith.constant 194 : index
    %907 = memref.load %arg3[%c194] : memref<224xf32, #tpu.memory_space<smem>>
    %908 = vector.broadcast %907 : f32 to vector<4x4xf32>
    %909 = arith.mulf %908, %882 : vector<4x4xf32>
    %910 = arith.addf %877, %909 : vector<4x4xf32>
    %c222 = arith.constant 222 : index
    %911 = memref.load %arg3[%c222] : memref<224xf32, #tpu.memory_space<smem>>
    %912 = vector.broadcast %911 : f32 to vector<4x4xf32>
    %913 = arith.mulf %912, %882 : vector<4x4xf32>
    %914 = arith.addf %881, %913 : vector<4x4xf32>
    %915 = vector.extract_strided_slice %716 {offsets = [0, 12], sizes = [4, 4], strides = [1, 1]} : vector<4x16xf32> to vector<4x4xf32>
    %c27 = arith.constant 27 : index
    %916 = memref.load %arg3[%c27] : memref<224xf32, #tpu.memory_space<smem>>
    %917 = vector.broadcast %916 : f32 to vector<4x4xf32>
    %918 = arith.mulf %917, %915 : vector<4x4xf32>
    %919 = arith.addf %886, %918 : vector<4x4xf32>
    %c55 = arith.constant 55 : index
    %920 = memref.load %arg3[%c55] : memref<224xf32, #tpu.memory_space<smem>>
    %921 = vector.broadcast %920 : f32 to vector<4x4xf32>
    %922 = arith.mulf %921, %915 : vector<4x4xf32>
    %923 = arith.addf %890, %922 : vector<4x4xf32>
    %c83 = arith.constant 83 : index
    %924 = memref.load %arg3[%c83] : memref<224xf32, #tpu.memory_space<smem>>
    %925 = vector.broadcast %924 : f32 to vector<4x4xf32>
    %926 = arith.mulf %925, %915 : vector<4x4xf32>
    %927 = arith.addf %894, %926 : vector<4x4xf32>
    %c111 = arith.constant 111 : index
    %928 = memref.load %arg3[%c111] : memref<224xf32, #tpu.memory_space<smem>>
    %929 = vector.broadcast %928 : f32 to vector<4x4xf32>
    %930 = arith.mulf %929, %915 : vector<4x4xf32>
    %931 = arith.addf %898, %930 : vector<4x4xf32>
    %c139 = arith.constant 139 : index
    %932 = memref.load %arg3[%c139] : memref<224xf32, #tpu.memory_space<smem>>
    %933 = vector.broadcast %932 : f32 to vector<4x4xf32>
    %934 = arith.mulf %933, %915 : vector<4x4xf32>
    %935 = arith.addf %902, %934 : vector<4x4xf32>
    %c167 = arith.constant 167 : index
    %936 = memref.load %arg3[%c167] : memref<224xf32, #tpu.memory_space<smem>>
    %937 = vector.broadcast %936 : f32 to vector<4x4xf32>
    %938 = arith.mulf %937, %915 : vector<4x4xf32>
    %939 = arith.addf %906, %938 : vector<4x4xf32>
    %c195 = arith.constant 195 : index
    %940 = memref.load %arg3[%c195] : memref<224xf32, #tpu.memory_space<smem>>
    %941 = vector.broadcast %940 : f32 to vector<4x4xf32>
    %942 = arith.mulf %941, %915 : vector<4x4xf32>
    %943 = arith.addf %910, %942 : vector<4x4xf32>
    %c223 = arith.constant 223 : index
    %944 = memref.load %arg3[%c223] : memref<224xf32, #tpu.memory_space<smem>>
    %945 = vector.broadcast %944 : f32 to vector<4x4xf32>
    %946 = arith.mulf %945, %915 : vector<4x4xf32>
    %947 = arith.addf %914, %946 : vector<4x4xf32>
    %c0_24 = arith.constant 0 : index
    %c0_25 = arith.constant 0 : index
    %c0_26 = arith.constant 0 : index
    %c0_27 = arith.constant 0 : index
    %948 = vector.load %arg5[%c0_24, %c0_25, %c0_26, %c0_27] : memref<1x8x4x4xf32, #tpu.memory_space<vmem>>, vector<1x1x4x4xf32>
    %949 = vector.shape_cast %948 : vector<1x1x4x4xf32> to vector<4x4xf32>
    %950 = vector.shape_cast %919 : vector<4x4xf32> to vector<1x1x4x4xf32>
    tpu.vector_store %arg5[%c0_24, %c0_25, %c0_26, %c0_27], %950 {strides = array<i32>} : memref<1x8x4x4xf32, #tpu.memory_space<vmem>>, vector<1x1x4x4xf32>,
    %c0_28 = arith.constant 0 : index
    %c1_29 = arith.constant 1 : index
    %c0_30 = arith.constant 0 : index
    %c0_31 = arith.constant 0 : index
    %951 = vector.load %arg5[%c0_28, %c1_29, %c0_30, %c0_31] : memref<1x8x4x4xf32, #tpu.memory_space<vmem>>, vector<1x1x4x4xf32>
    %952 = vector.shape_cast %951 : vector<1x1x4x4xf32> to vector<4x4xf32>
    %953 = vector.shape_cast %923 : vector<4x4xf32> to vector<1x1x4x4xf32>
    tpu.vector_store %arg5[%c0_28, %c1_29, %c0_30, %c0_31], %953 {strides = array<i32>} : memref<1x8x4x4xf32, #tpu.memory_space<vmem>>, vector<1x1x4x4xf32>,
    %c0_32 = arith.constant 0 : index
    %c2_33 = arith.constant 2 : index
    %c0_34 = arith.constant 0 : index
    %c0_35 = arith.constant 0 : index
    %954 = vector.load %arg5[%c0_32, %c2_33, %c0_34, %c0_35] : memref<1x8x4x4xf32, #tpu.memory_space<vmem>>, vector<1x1x4x4xf32>
    %955 = vector.shape_cast %954 : vector<1x1x4x4xf32> to vector<4x4xf32>
    %956 = vector.shape_cast %927 : vector<4x4xf32> to vector<1x1x4x4xf32>
    tpu.vector_store %arg5[%c0_32, %c2_33, %c0_34, %c0_35], %956 {strides = array<i32>} : memref<1x8x4x4xf32, #tpu.memory_space<vmem>>, vector<1x1x4x4xf32>,
    %c0_36 = arith.constant 0 : index
    %c3_37 = arith.constant 3 : index
    %c0_38 = arith.constant 0 : index
    %c0_39 = arith.constant 0 : index
    %957 = vector.load %arg5[%c0_36, %c3_37, %c0_38, %c0_39] : memref<1x8x4x4xf32, #tpu.memory_space<vmem>>, vector<1x1x4x4xf32>
    %958 = vector.shape_cast %957 : vector<1x1x4x4xf32> to vector<4x4xf32>
    %959 = vector.shape_cast %931 : vector<4x4xf32> to vector<1x1x4x4xf32>
    tpu.vector_store %arg5[%c0_36, %c3_37, %c0_38, %c0_39], %959 {strides = array<i32>} : memref<1x8x4x4xf32, #tpu.memory_space<vmem>>, vector<1x1x4x4xf32>,
    %c0_40 = arith.constant 0 : index
    %c4_41 = arith.constant 4 : index
    %c0_42 = arith.constant 0 : index
    %c0_43 = arith.constant 0 : index
    %960 = vector.load %arg5[%c0_40, %c4_41, %c0_42, %c0_43] : memref<1x8x4x4xf32, #tpu.memory_space<vmem>>, vector<1x1x4x4xf32>
    %961 = vector.shape_cast %960 : vector<1x1x4x4xf32> to vector<4x4xf32>
    %962 = vector.shape_cast %935 : vector<4x4xf32> to vector<1x1x4x4xf32>
    tpu.vector_store %arg5[%c0_40, %c4_41, %c0_42, %c0_43], %962 {strides = array<i32>} : memref<1x8x4x4xf32, #tpu.memory_space<vmem>>, vector<1x1x4x4xf32>,
    %c0_44 = arith.constant 0 : index
    %c5_45 = arith.constant 5 : index
    %c0_46 = arith.constant 0 : index
    %c0_47 = arith.constant 0 : index
    %963 = vector.load %arg5[%c0_44, %c5_45, %c0_46, %c0_47] : memref<1x8x4x4xf32, #tpu.memory_space<vmem>>, vector<1x1x4x4xf32>
    %964 = vector.shape_cast %963 : vector<1x1x4x4xf32> to vector<4x4xf32>
    %965 = vector.shape_cast %939 : vector<4x4xf32> to vector<1x1x4x4xf32>
    tpu.vector_store %arg5[%c0_44, %c5_45, %c0_46, %c0_47], %965 {strides = array<i32>} : memref<1x8x4x4xf32, #tpu.memory_space<vmem>>, vector<1x1x4x4xf32>,
    %c0_48 = arith.constant 0 : index
    %c6_49 = arith.constant 6 : index
    %c0_50 = arith.constant 0 : index
    %c0_51 = arith.constant 0 : index
    %966 = vector.load %arg5[%c0_48, %c6_49, %c0_50, %c0_51] : memref<1x8x4x4xf32, #tpu.memory_space<vmem>>, vector<1x1x4x4xf32>
    %967 = vector.shape_cast %966 : vector<1x1x4x4xf32> to vector<4x4xf32>
    %968 = vector.shape_cast %943 : vector<4x4xf32> to vector<1x1x4x4xf32>
    tpu.vector_store %arg5[%c0_48, %c6_49, %c0_50, %c0_51], %968 {strides = array<i32>} : memref<1x8x4x4xf32, #tpu.memory_space<vmem>>, vector<1x1x4x4xf32>,
    %c0_52 = arith.constant 0 : index
    %c7_53 = arith.constant 7 : index
    %c0_54 = arith.constant 0 : index
    %c0_55 = arith.constant 0 : index
    %969 = vector.load %arg5[%c0_52, %c7_53, %c0_54, %c0_55] : memref<1x8x4x4xf32, #tpu.memory_space<vmem>>, vector<1x1x4x4xf32>
    %970 = vector.shape_cast %969 : vector<1x1x4x4xf32> to vector<4x4xf32>
    %971 = vector.shape_cast %947 : vector<4x4xf32> to vector<1x1x4x4xf32>
    tpu.vector_store %arg5[%c0_52, %c7_53, %c0_54, %c0_55], %971 {strides = array<i32>} : memref<1x8x4x4xf32, #tpu.memory_space<vmem>>, vector<1x1x4x4xf32>,
    return
  }
  func.func @transform_0(%arg0: i32, %arg1: i32) -> (i32, i32, i32, i32) {
    %c0_i32 = arith.constant 0 : i32
    %c0_i32_0 = arith.constant 0 : i32
    %c0_i32_1 = arith.constant 0 : i32
    return %arg0, %c0_i32, %arg1, %c0_i32_0 : i32, i32, i32, i32
  }
  func.func @transform_1(%arg0: i32, %arg1: i32) -> i32 {
    %c0_i32 = arith.constant 0 : i32
    %c0_i32_0 = arith.constant 0 : i32
    return %c0_i32 : i32
  }
  func.func @transform_2(%arg0: i32, %arg1: i32) -> i32 {
    %c0_i32 = arith.constant 0 : i32
    %c0_i32_0 = arith.constant 0 : i32
    return %c0_i32 : i32
  }
  func.func @transform_3(%arg0: i32, %arg1: i32) -> (i32, i32, i32, i32) {
    %c0_i32 = arith.constant 0 : i32
    %c0_i32_0 = arith.constant 0 : i32
    %c0_i32_1 = arith.constant 0 : i32
    return %arg0, %c0_i32, %arg1, %c0_i32_0 : i32, i32, i32, i32
  }
}

</mosaic_0001>

<llo_original>
// kernel: tpu_custom_call.1
$region0: #{tpu_custom_call.1}
  #allocation0 [shape = 'u32[]', space=smem, size = 0x4, offset = 0x4, fixed_abs, tag = 'smem constant byte address 0x4 - core index']
  #allocation1 [shape = 'u32[144,128]{1,0:T(1,128)}', space=vmem, size = 0x12000, scoped, tag = 'internal scratch']
  %s0 = inlined_call_operand.hbm [shape: f32[2,4,4,16], index: 0, kind: input, shape index: {}]
  %s1 = inlined_call_operand.vmem [shape: f32[224], index: 1, kind: input, shape index: {}]
  %s2 = inlined_call_operand.vmem [shape: f32[8], index: 2, kind: input, shape index: {}]
  %s3 = inlined_call_operand.vmem [shape: f32[2,8,4,4], index: 3, kind: output, shape index: {}]
  %s4 = sld [smem:[#allocation0]]
  $region57: #{tpu_custom_call.1} parent=0
    _
  %s6 = ssub.s32 1, %s4
  %s7 = scalar_select 0, %s6, %s4
  $region1: #{tpu_custom_call.1} parent=0
    #allocation2 [shape = 'u8[16384]{0}', space=vmem, size = 0x4000, scoped, tag = 'input window, operand 0']
    #allocation3 [shape = 's32[2]{0}', space=sflag, size = 0x8, scoped, tag = 'scoped memory for tpu_custom_call.1']
    #allocation4 [shape = 's32[2]{0}', space=sflag, size = 0x8, scoped, tag = 'scoped memory for tpu_custom_call.1']
    #allocation5 [shape = 'u8[1024]{0}', space=smem, size = 0x400, scoped, tag = 'input window, operand 1, single buffered']
    #allocation6 [shape = 'u8[512]{0}', space=smem, size = 0x200, scoped, tag = 'input window, operand 2, single buffered']
    #allocation7 [shape = 's32[1]{0}', space=sflag, size = 0x4, scoped, tag = 'scoped memory for tpu_custom_call.1']
    %8 = vsyncpa [#allocation3], 0
    %s9 = scalar_lea.sflag [#allocation3], 1
    %10 = vsyncpa %s9, 0
    %11 = vsyncpa [#allocation4], 0
    %12 = vsyncpa [#allocation7], 0
    loop: start=0, step=1, limit=4
    $region2: #{tpu_custom_call.1} parent=1 // loop_pre_header
      _
    $region3: #{tpu_custom_call.1} parent=1 // loop_header
      %s14 = sphi 0, %s18
      %p15 = scmp.ge.s32.totalorder %s14, 4
      %s21 = sphi 0, %s33
      %s22 = sphi 0, %s29
      %s23 = sphi 0, %s21
      %s24 = sphi 0, %s22
      %s25 = sphi 0, %s23
      %s26 = sphi 0, %s24
      %s38 = sphi 0, %s40
      %s41 = sphi 0, %s38
      %s42 = sphi 0, %s41
      %s58 = sphi 0, %s42
      %s62 = sphi 0, %s62
      %s64 = sphi 0, %s62
      %s65 = sphi 0, %s64
      %s79 = sphi 0, %s65
      %s83 = sphi 0, %s83
      %s85 = sphi 0, %s83
      %s86 = sphi 0, %s85
      %s100 = sphi 0, %s86
      %s108 = sphi 0, %s110
      %s111 = sphi 0, %s108
      %s112 = sphi 0, %s111
      %s128 = sphi 0, %s112
    $region4: #{tpu_custom_call.1} parent=1 // loop_header_branch
      %17 = sbr.rel (%p15) target = $region8
    $region5: #{tpu_custom_call.1} parent=1 // loop_body
      %s19 = ssub.s32 %s14, 1
      %s20 = ssub.s32 %s14, 2
      %s27 = sadd.s32 1, %s22
      %p28 = scmp.ge.s32.totalorder %s27, 1
      %s29 = scalar_select %p28, 0, %s27
      %s30 = sadd.s32 1, %s21
      %s31 = scalar_select %p28, %s30, %s21
      %p32 = scmp.ge.s32.totalorder %s31, 2
      %s33 = scalar_select %p32, 0, %s31
      %s34 = ssub.s32 %s21, %s33
      %s35 = ssub.s32 %s22, %s29
      %s36 = sor.u32 %s34, %s35
      %p37 = scmp.eq.s32.totalorder %s36, 0
      %s39 = sadd.s32 %s38, 1
      %s40 = scalar_select %p37, %s38, %s39
      %p43 = pneg %p37
      %p44 = scmp.eq.s32.totalorder %s14, 1
      %p45 = por %p43, %p44
      %p46 = scmp.ne.s32.totalorder %s38, %s41
      %p47 = scmp.eq.s32.totalorder %s14, 0
      %p48 = por %p46, %p47
      %p49 = scmp.ne.s32.totalorder %s38, %s41
      %p50 = scmp.eq.s32.totalorder %s19, 1
      %p51 = por %p49, %p50
      %p52 = scmp.ne.s32.totalorder %s41, %s42
      %p53 = scmp.eq.s32.totalorder %s19, 0
      %p54 = por %p52, %p53
      %p55 = scmp.ne.s32.totalorder %s41, %s42
      %p56 = scmp.eq.s32.totalorder %s20, 1
      %p57 = por %p55, %p56
      %p59 = scmp.ne.s32.totalorder %s42, %s58
      %p60 = scmp.eq.s32.totalorder %s20, 0
      %p61 = por %p59, %p60
      %s63 = sadd.s32 %s62, 1
      %p66 = scmp.eq.s32.totalorder %s14, 1
      %p67 = scmp.ne.s32.totalorder %s62, %s64
      %p68 = scmp.eq.s32.totalorder %s14, 0
      %p69 = por %p67, %p68
      %p70 = scmp.ne.s32.totalorder %s62, %s64
      %p71 = scmp.eq.s32.totalorder %s19, 1
      %p72 = por %p70, %p71
      %p73 = scmp.ne.s32.totalorder %s64, %s65
      %p74 = scmp.eq.s32.totalorder %s19, 0
      %p75 = por %p73, %p74
      %p76 = scmp.ne.s32.totalorder %s64, %s65
      %p77 = scmp.eq.s32.totalorder %s20, 1
      %p78 = por %p76, %p77
      %p80 = scmp.ne.s32.totalorder %s65, %s79
      %p81 = scmp.eq.s32.totalorder %s20, 0
      %p82 = por %p80, %p81
      %s84 = sadd.s32 %s83, 1
      %p87 = scmp.eq.s32.totalorder %s14, 1
      %p88 = scmp.ne.s32.totalorder %s83, %s85
      %p89 = scmp.eq.s32.totalorder %s14, 0
      %p90 = por %p88, %p89
      %p91 = scmp.ne.s32.totalorder %s83, %s85
      %p92 = scmp.eq.s32.totalorder %s19, 1
      %p93 = por %p91, %p92
      %p94 = scmp.ne.s32.totalorder %s85, %s86
      %p95 = scmp.eq.s32.totalorder %s19, 0
      %p96 = por %p94, %p95
      %p97 = scmp.ne.s32.totalorder %s85, %s86
      %p98 = scmp.eq.s32.totalorder %s20, 1
      %p99 = por %p97, %p98
      %p101 = scmp.ne.s32.totalorder %s86, %s100
      %p102 = scmp.eq.s32.totalorder %s20, 0
      %p103 = por %p101, %p102
      %s104 = ssub.s32 %s21, %s33
      %s105 = ssub.s32 %s22, %s29
      %s106 = sor.u32 %s104, %s105
      %p107 = scmp.eq.s32.totalorder %s106, 0
      %s109 = sadd.s32 %s108, 1
      %s110 = scalar_select %p107, %s108, %s109
      %p113 = pneg %p107
      %p114 = scmp.eq.s32.totalorder %s14, 1
      %p115 = por %p113, %p114
      %p116 = scmp.ne.s32.totalorder %s108, %s111
      %p117 = scmp.eq.s32.totalorder %s14, 0
      %p118 = por %p116, %p117
      %p119 = scmp.ne.s32.totalorder %s108, %s111
      %p120 = scmp.eq.s32.totalorder %s19, 1
      %p121 = por %p119, %p120
      %p122 = scmp.ne.s32.totalorder %s111, %s112
      %p123 = scmp.eq.s32.totalorder %s19, 0
      %p124 = por %p122, %p123
      %p125 = scmp.ne.s32.totalorder %s111, %s112
      %p126 = scmp.eq.s32.totalorder %s20, 1
      %p127 = por %p125, %p126
      %p129 = scmp.ne.s32.totalorder %s112, %s128
      %p130 = scmp.eq.s32.totalorder %s20, 0
      %p131 = por %p129, %p130
      %p132 = scmp.le.s32.totalorder 1, %s14
      %p133 = scmp.lt.s32.totalorder %s14, 3
      %p134 = pnand %p132, %p133
      %p135 = pneg %p134
      // Predicated region
      $region9: #{tpu_custom_call.1} parent=5 // pred_check
        _
      $region10: #{tpu_custom_call.1} parent=5 // pred_check_branch
        %137 = sbr.rel (%p134) target = $region12
      $region11: #{tpu_custom_call.1} parent=5 // pred_region
        %s138 = ssub.s32 %s14, 1
        // Predicated region
        $region13: #{tpu_custom_call.1} parent=11 // pred_check
          %p139 = pneg %p75
        $region14: #{tpu_custom_call.1} parent=11 // pred_check_branch
          %141 = sbr.rel (%p139) target = $region16
        $region15: #{tpu_custom_call.1} parent=11 // pred_region
          %s143 = ssub.s32 32, 32
          %144 = vsyncadd [#allocation4], %s143
          %s146 = sshll.u32 %s1, 4
          %s147 = int_to_ptr.vmem [resolvable:$true] %s146
          %149 = dma.vmem_to_smem %s147, 32, [#allocation5], [#allocation4]
        $region16: #{tpu_custom_call.1} parent=11 // pred_fallthru
          _
        // Predicated region
        $region17: #{tpu_custom_call.1} parent=11 // pred_check
          %p150 = pneg %p96
        $region18: #{tpu_custom_call.1} parent=11 // pred_check_branch
          %152 = sbr.rel (%p150) target = $region20
        $region19: #{tpu_custom_call.1} parent=11 // pred_region
          %s154 = ssub.s32 16, 16
          %155 = vsyncadd [#allocation7], %s154
          %s157 = sshll.u32 %s2, 4
          %s158 = int_to_ptr.vmem [resolvable:$true] %s157
          %160 = dma.vmem_to_smem %s158, 16, [#allocation6], [#allocation7]
        $region20: #{tpu_custom_call.1} parent=11 // pred_fallthru
          _
      $region12: #{tpu_custom_call.1} parent=5 // pred_fallthru
        _
      %p161 = scmp.lt.s32.totalorder %s14, 2
      // Predicated region
      $region21: #{tpu_custom_call.1} parent=5 // pred_check
        %p162 = pneg %p161
      $region22: #{tpu_custom_call.1} parent=5 // pred_check_branch
        %164 = sbr.rel (%p162) target = $region24
      $region23: #{tpu_custom_call.1} parent=5 // pred_region
        // Predicated region
        $region25: #{tpu_custom_call.1} parent=23 // pred_check
          %p165 = pneg %p48
        $region26: #{tpu_custom_call.1} parent=23 // pred_check_branch
          %167 = sbr.rel (%p165) target = $region28
        $region27: #{tpu_custom_call.1} parent=23 // pred_region
          %s168 = sand.u32 %s38, 1
          %s169 = scalar_lea.sflag [#allocation3], %s168
          %s170 = sand.u32 %s38, 1
          %s171 = smul.addr %s170, 16
          %s172 = scalar_lea.vmem [#allocation2], %s171
          %s174 = ssub.s32 256, 256
          %175 = vsyncadd %s169, %s174
          %s176 = smul.addr %s21, 4
          %s177 = sadd.s32 %s22, %s176
          %s178 = smul.addr %s177, 64
          %s179 = scalar_lea.hbm %s0, %s178
          %s180 = sshll.u32 %s172, 4
          %s181 = int_to_ptr.vmem [resolvable:$true] %s180
          %186 = dma.hbm_to_vmem [thread:$0]  %s179, 256, %s181, %s169, 64, 64, 4
        $region28: #{tpu_custom_call.1} parent=23 // pred_fallthru
          _
      $region24: #{tpu_custom_call.1} parent=5 // pred_fallthru
        _
      %p187 = scmp.le.s32.totalorder 1, %s14
      %p188 = scmp.lt.s32.totalorder %s14, 3
      %p189 = pnand %p187, %p188
      %p190 = pneg %p189
      // Predicated region
      $region29: #{tpu_custom_call.1} parent=5 // pred_check
        _
      $region30: #{tpu_custom_call.1} parent=5 // pred_check_branch
        %192 = sbr.rel (%p189) target = $region32
      $region31: #{tpu_custom_call.1} parent=5 // pred_region
        %s193 = ssub.s32 %s14, 1
        %s194 = sand.u32 %s41, 1
        %s195 = scalar_lea.sflag [#allocation3], %s194
        %s196 = sand.u32 %s41, 1
        %s197 = smul.addr %s196, 16
        %s198 = scalar_lea.vmem [#allocation2], %s197
        // Predicated region
        $region33: #{tpu_custom_call.1} parent=31 // pred_check
          %p199 = pneg %p54
        $region34: #{tpu_custom_call.1} parent=31 // pred_check_branch
          %201 = sbr.rel (%p199) target = $region36
        $region35: #{tpu_custom_call.1} parent=31 // pred_region
          %202 = dma.done %s195, 256
        $region36: #{tpu_custom_call.1} parent=31 // pred_fallthru
          _
        // Predicated region
        $region37: #{tpu_custom_call.1} parent=31 // pred_check
          %p203 = pneg %p75
        $region38: #{tpu_custom_call.1} parent=31 // pred_check_branch
          %205 = sbr.rel (%p203) target = $region40
        $region39: #{tpu_custom_call.1} parent=31 // pred_region
          %206 = dma.done [#allocation4], 32
        $region40: #{tpu_custom_call.1} parent=31 // pred_fallthru
          _
        // Predicated region
        $region41: #{tpu_custom_call.1} parent=31 // pred_check
          %p207 = pneg %p96
        $region42: #{tpu_custom_call.1} parent=31 // pred_check_branch
          %209 = sbr.rel (%p207) target = $region44
        $region43: #{tpu_custom_call.1} parent=31 // pred_region
          %210 = dma.done [#allocation7], 16
        $region44: #{tpu_custom_call.1} parent=31 // pred_fallthru
          _
        %211 = sfence
        %s212 = sand.u32 %s41, 1
        %s213 = scalar_lea.sflag [#allocation3], %s212
        %s214 = sand.u32 %s41, 1
        %s215 = smul.addr %s214, 16
        %s216 = scalar_lea.vmem [#allocation2], %s215
        %p217 = pneg %p54
        %p218 = pneg %p51
        %p219 = pneg %p75
        %p220 = pneg %p72
        %p221 = pneg %p96
        %p222 = pneg %p93
        %p223 = pneg %p124
        %p224 = pneg %p121
        %p225 = scmp.lt.s32.totalorder %s23, 1
        %s226 = scalar_select %p225, %s23, 1
        %p227 = scmp.lt.s32.totalorder %s24, 0
        %s228 = scalar_select %p227, %s24, 0
        %s229 = smul.addr %s226, 8
        %s230 = sadd.s32 %s228, %s229
        %s231 = smul.addr %s230, 4
        %s232 = scalar_lea.vmem %s3, %s231
        %p233 = scmp.lt.s32.totalorder %s23, 1
        %s234 = scalar_select %p233, %s23, 1
        %p235 = scmp.lt.s32.totalorder %s24, 0
        %s236 = scalar_select %p235, %s24, 0
        %s237 = smul.addr %s234, 8
        %s238 = sadd.s32 %s236, %s237
        %s239 = smul.addr %s238, 4
        %s240 = scalar_lea.vmem %s3, %s239
        %s241 = sld [smem:[#allocation6]]
        %v242 = vstv %s241
        %s243 = sld [smem:[#allocation6 + $0x1]]
        %v244 = vstv %s243
        %s245 = sld [smem:[#allocation6 + $0x2]]
        %v246 = vstv %s245
        %s247 = sld [smem:[#allocation6 + $0x3]]
        %v248 = vstv %s247
        %s249 = sld [smem:[#allocation6 + $0x4]]
        %v250 = vstv %s249
        %s251 = sld [smem:[#allocation6 + $0x5]]
        %v252 = vstv %s251
        %s253 = sld [smem:[#allocation6 + $0x6]]
        %v254 = vstv %s253
        %s255 = sld [smem:[#allocation6 + $0x7]]
        %v256 = vstv %s255
        %v257 = vld [vmem:[%s198] sm:$0xf]
        %s258 = sld [smem:[#allocation5]]
        %v259 = vstv %s258
        %v260 = vmul.f32 %v259, %v257
        %v261 = vadd.f32 %v242, %v260
        %s262 = sld [smem:[#allocation5 + $0x1c]]
        %v263 = vstv %s262
        %v264 = vmul.f32 %v263, %v257
        %v265 = vadd.f32 %v244, %v264
        %s266 = sld [smem:[#allocation5 + $0x38]]
        %v267 = vstv %s266
        %v268 = vmul.f32 %v267, %v257
        %v269 = vadd.f32 %v246, %v268
        %s270 = sld [smem:[#allocation5 + $0x54]]
        %v271 = vstv %s270
        %v272 = vmul.f32 %v271, %v257
        %v273 = vadd.f32 %v248, %v272
        %s274 = sld [smem:[#allocation5 + $0x70]]
        %v275 = vstv %s274
        %v276 = vmul.f32 %v275, %v257
        %v277 = vadd.f32 %v250, %v276
        %s278 = sld [smem:[#allocation5 + $0x8c]]
        %v279 = vstv %s278
        %v280 = vmul.f32 %v279, %v257
        %v281 = vadd.f32 %v252, %v280
        %s282 = sld [smem:[#allocation5 + $0xa8]]
        %v283 = vstv %s282
        %v284 = vmul.f32 %v283, %v257
        %v285 = vadd.f32 %v254, %v284
        %s286 = sld [smem:[#allocation5 + $0xc4]]
        %v287 = vstv %s286
        %v288 = vmul.f32 %v287, %v257
        %v289 = vadd.f32 %v256, %v288
        %s290 = sld [smem:[#allocation5 + $0x1]]
        %v291 = vstv %s290
        %v292 = vmul.f32 %v291, %v257
        %294 = vrot.lane.b32.xlu0 %v292, 126
        %v295 = vpop.permute.xlu0 %294
        %v297 = vadd.f32 %v261, %v295
        %s298 = sld [smem:[#allocation5 + $0x1d]]
        %v299 = vstv %s298
        %v300 = vmul.f32 %v299, %v257
        %302 = vrot.lane.b32.xlu0 %v300, 126
        %v303 = vpop.permute.xlu0 %302
        %v305 = vadd.f32 %v265, %v303
        %s306 = sld [smem:[#allocation5 + $0x39]]
        %v307 = vstv %s306
        %v308 = vmul.f32 %v307, %v257
        %310 = vrot.lane.b32.xlu0 %v308, 126
        %v311 = vpop.permute.xlu0 %310
        %v313 = vadd.f32 %v269, %v311
        %s314 = sld [smem:[#allocation5 + $0x55]]
        %v315 = vstv %s314
        %v316 = vmul.f32 %v315, %v257
        %318 = vrot.lane.b32.xlu0 %v316, 126
        %v319 = vpop.permute.xlu0 %318
        %v321 = vadd.f32 %v273, %v319
        %s322 = sld [smem:[#allocation5 + $0x71]]
        %v323 = vstv %s322
        %v324 = vmul.f32 %v323, %v257
        %326 = vrot.lane.b32.xlu0 %v324, 126
        %v327 = vpop.permute.xlu0 %326
        %v329 = vadd.f32 %v277, %v327
        %s330 = sld [smem:[#allocation5 + $0x8d]]
        %v331 = vstv %s330
        %v332 = vmul.f32 %v331, %v257
        %334 = vrot.lane.b32.xlu0 %v332, 126
        %v335 = vpop.permute.xlu0 %334
        %v337 = vadd.f32 %v281, %v335
        %s338 = sld [smem:[#allocation5 + $0xa9]]
        %v339 = vstv %s338
        %v340 = vmul.f32 %v339, %v257
        %342 = vrot.lane.b32.xlu0 %v340, 126
        %v343 = vpop.permute.xlu0 %342
        %v345 = vadd.f32 %v285, %v343
        %s346 = sld [smem:[#allocation5 + $0xc5]]
        %v347 = vstv %s346
        %v348 = vmul.f32 %v347, %v257
        %350 = vrot.lane.b32.xlu0 %v348, 126
        %v351 = vpop.permute.xlu0 %350
        %v353 = vadd.f32 %v289, %v351
        %s354 = sld [smem:[#allocation5 + $0x2]]
        %v355 = vstv %s354
        %v356 = vmul.f32 %v355, %v257
        %358 = vrot.lane.b32.xlu0 %v356, 124
        %v359 = vpop.permute.xlu0 %358
        %v361 = vadd.f32 %v297, %v359
        %s362 = sld [smem:[#allocation5 + $0x1e]]
        %v363 = vstv %s362
        %v364 = vmul.f32 %v363, %v257
        %366 = vrot.lane.b32.xlu0 %v364, 124
        %v367 = vpop.permute.xlu0 %366
        %v369 = vadd.f32 %v305, %v367
        %s370 = sld [smem:[#allocation5 + $0x3a]]
        %v371 = vstv %s370
        %v372 = vmul.f32 %v371, %v257
        %374 = vrot.lane.b32.xlu0 %v372, 124
        %v375 = vpop.permute.xlu0 %374
        %v377 = vadd.f32 %v313, %v375
        %s378 = sld [smem:[#allocation5 + $0x56]]
        %v379 = vstv %s378
        %v380 = vmul.f32 %v379, %v257
        %382 = vrot.lane.b32.xlu0 %v380, 124
        %v383 = vpop.permute.xlu0 %382
        %v385 = vadd.f32 %v321, %v383
        %s386 = sld [smem:[#allocation5 + $0x72]]
        %v387 = vstv %s386
        %v388 = vmul.f32 %v387, %v257
        %390 = vrot.lane.b32.xlu0 %v388, 124
        %v391 = vpop.permute.xlu0 %390
        %v393 = vadd.f32 %v329, %v391
        %s394 = sld [smem:[#allocation5 + $0x8e]]
        %v395 = vstv %s394
        %v396 = vmul.f32 %v395, %v257
        %398 = vrot.lane.b32.xlu0 %v396, 124
        %v399 = vpop.permute.xlu0 %398
        %v401 = vadd.f32 %v337, %v399
        %s402 = sld [smem:[#allocation5 + $0xaa]]
        %v403 = vstv %s402
        %v404 = vmul.f32 %v403, %v257
        %406 = vrot.lane.b32.xlu0 %v404, 124
        %v407 = vpop.permute.xlu0 %406
        %v409 = vadd.f32 %v345, %v407
        %s410 = sld [smem:[#allocation5 + $0xc6]]
        %v411 = vstv %s410
        %v412 = vmul.f32 %v411, %v257
        %414 = vrot.lane.b32.xlu0 %v412, 124
        %v415 = vpop.permute.xlu0 %414
        %v417 = vadd.f32 %v353, %v415
        %s418 = sld [smem:[#allocation5 + $0x3]]
        %v419 = vstv %s418
        %v420 = vmul.f32 %v419, %v257
        %422 = vrot.lane.b32.xlu0 %v420, 122
        %v423 = vpop.permute.xlu0 %422
        %v425 = vadd.f32 %v361, %v423
        %s426 = sld [smem:[#allocation5 + $0x1f]]
        %v427 = vstv %s426
        %v428 = vmul.f32 %v427, %v257
        %430 = vrot.lane.b32.xlu0 %v428, 122
        %v431 = vpop.permute.xlu0 %430
        %v433 = vadd.f32 %v369, %v431
        %s434 = sld [smem:[#allocation5 + $0x3b]]
        %v435 = vstv %s434
        %v436 = vmul.f32 %v435, %v257
        %438 = vrot.lane.b32.xlu0 %v436, 122
        %v439 = vpop.permute.xlu0 %438
        %v441 = vadd.f32 %v377, %v439
        %s442 = sld [smem:[#allocation5 + $0x57]]
        %v443 = vstv %s442
        %v444 = vmul.f32 %v443, %v257
        %446 = vrot.lane.b32.xlu0 %v444, 122
        %v447 = vpop.permute.xlu0 %446
        %v449 = vadd.f32 %v385, %v447
        %s450 = sld [smem:[#allocation5 + $0x73]]
        %v451 = vstv %s450
        %v452 = vmul.f32 %v451, %v257
        %454 = vrot.lane.b32.xlu0 %v452, 122
        %v455 = vpop.permute.xlu0 %454
        %v457 = vadd.f32 %v393, %v455
        %s458 = sld [smem:[#allocation5 + $0x8f]]
        %v459 = vstv %s458
        %v460 = vmul.f32 %v459, %v257
        %462 = vrot.lane.b32.xlu0 %v460, 122
        %v463 = vpop.permute.xlu0 %462
        %v465 = vadd.f32 %v401, %v463
        %s466 = sld [smem:[#allocation5 + $0xab]]
        %v467 = vstv %s466
        %v468 = vmul.f32 %v467, %v257
        %470 = vrot.lane.b32.xlu0 %v468, 122
        %v471 = vpop.permute.xlu0 %470
        %v473 = vadd.f32 %v409, %v471
        %s474 = sld [smem:[#allocation5 + $0xc7]]
        %v475 = vstv %s474
        %v476 = vmul.f32 %v475, %v257
        %478 = vrot.lane.b32.xlu0 %v476, 122
        %v479 = vpop.permute.xlu0 %478
        %v481 = vadd.f32 %v417, %v479
        %s482 = sld [smem:[#allocation5 + $0x4]]
        %v483 = vstv %s482
        %v484 = vmul.f32 %v483, %v257
        %486 = vrot.lane.b32.xlu0 %v484, 120
        %v487 = vpop.permute.xlu0 %486
        %v489 = vadd.f32 %v425, %v487
        %s490 = sld [smem:[#allocation5 + $0x20]]
        %v491 = vstv %s490
        %v492 = vmul.f32 %v491, %v257
        %494 = vrot.lane.b32.xlu0 %v492, 120
        %v495 = vpop.permute.xlu0 %494
        %v497 = vadd.f32 %v433, %v495
        %s498 = sld [smem:[#allocation5 + $0x3c]]
        %v499 = vstv %s498
        %v500 = vmul.f32 %v499, %v257
        %502 = vrot.lane.b32.xlu0 %v500, 120
        %v503 = vpop.permute.xlu0 %502
        %v505 = vadd.f32 %v441, %v503
        %s506 = sld [smem:[#allocation5 + $0x58]]
        %v507 = vstv %s506
        %v508 = vmul.f32 %v507, %v257
        %510 = vrot.lane.b32.xlu0 %v508, 120
        %v511 = vpop.permute.xlu0 %510
        %v513 = vadd.f32 %v449, %v511
        %s514 = sld [smem:[#allocation5 + $0x74]]
        %v515 = vstv %s514
        %v516 = vmul.f32 %v515, %v257
        %518 = vrot.lane.b32.xlu0 %v516, 120
        %v519 = vpop.permute.xlu0 %518
        %v521 = vadd.f32 %v457, %v519
        %s522 = sld [smem:[#allocation5 + $0x90]]
        %v523 = vstv %s522
        %v524 = vmul.f32 %v523, %v257
        %526 = vrot.lane.b32.xlu0 %v524, 120
        %v527 = vpop.permute.xlu0 %526
        %v529 = vadd.f32 %v465, %v527
        %s530 = sld [smem:[#allocation5 + $0xac]]
        %v531 = vstv %s530
        %v532 = vmul.f32 %v531, %v257
        %534 = vrot.lane.b32.xlu0 %v532, 120
        %v535 = vpop.permute.xlu0 %534
        %v537 = vadd.f32 %v473, %v535
        %s538 = sld [smem:[#allocation5 + $0xc8]]
        %v539 = vstv %s538
        %v540 = vmul.f32 %v539, %v257
        %542 = vrot.lane.b32.xlu0 %v540, 120
        %v543 = vpop.permute.xlu0 %542
        %v545 = vadd.f32 %v481, %v543
        %s546 = sld [smem:[#allocation5 + $0x5]]
        %v547 = vstv %s546
        %v548 = vmul.f32 %v547, %v257
        %550 = vrot.lane.b32.xlu0 %v548, 118
        %v551 = vpop.permute.xlu0 %550
        %v553 = vadd.f32 %v489, %v551
        %s554 = sld [smem:[#allocation5 + $0x21]]
        %v555 = vstv %s554
        %v556 = vmul.f32 %v555, %v257
        %558 = vrot.lane.b32.xlu0 %v556, 118
        %v559 = vpop.permute.xlu0 %558
        %v561 = vadd.f32 %v497, %v559
        %s562 = sld [smem:[#allocation5 + $0x3d]]
        %v563 = vstv %s562
        %v564 = vmul.f32 %v563, %v257
        %566 = vrot.lane.b32.xlu0 %v564, 118
        %v567 = vpop.permute.xlu0 %566
        %v569 = vadd.f32 %v505, %v567
        %s570 = sld [smem:[#allocation5 + $0x59]]
        %v571 = vstv %s570
        %v572 = vmul.f32 %v571, %v257
        %574 = vrot.lane.b32.xlu0 %v572, 118
        %v575 = vpop.permute.xlu0 %574
        %v577 = vadd.f32 %v513, %v575
        %s578 = sld [smem:[#allocation5 + $0x75]]
        %v579 = vstv %s578
        %v580 = vmul.f32 %v579, %v257
        %582 = vrot.lane.b32.xlu0 %v580, 118
        %v583 = vpop.permute.xlu0 %582
        %v585 = vadd.f32 %v521, %v583
        %s586 = sld [smem:[#allocation5 + $0x91]]
        %v587 = vstv %s586
        %v588 = vmul.f32 %v587, %v257
        %590 = vrot.lane.b32.xlu0 %v588, 118
        %v591 = vpop.permute.xlu0 %590
        %v593 = vadd.f32 %v529, %v591
        %s594 = sld [smem:[#allocation5 + $0xad]]
        %v595 = vstv %s594
        %v596 = vmul.f32 %v595, %v257
        %598 = vrot.lane.b32.xlu0 %v596, 118
        %v599 = vpop.permute.xlu0 %598
        %v601 = vadd.f32 %v537, %v599
        %s602 = sld [smem:[#allocation5 + $0xc9]]
        %v603 = vstv %s602
        %v604 = vmul.f32 %v603, %v257
        %606 = vrot.lane.b32.xlu0 %v604, 118
        %v607 = vpop.permute.xlu0 %606
        %v609 = vadd.f32 %v545, %v607
        %s610 = sld [smem:[#allocation5 + $0x6]]
        %v611 = vstv %s610
        %v612 = vmul.f32 %v611, %v257
        %614 = vrot.lane.b32.xlu0 %v612, 116
        %v615 = vpop.permute.xlu0 %614
        %v617 = vadd.f32 %v553, %v615
        %s618 = sld [smem:[#allocation5 + $0x22]]
        %v619 = vstv %s618
        %v620 = vmul.f32 %v619, %v257
        %622 = vrot.lane.b32.xlu0 %v620, 116
        %v623 = vpop.permute.xlu0 %622
        %v625 = vadd.f32 %v561, %v623
        %s626 = sld [smem:[#allocation5 + $0x3e]]
        %v627 = vstv %s626
        %v628 = vmul.f32 %v627, %v257
        %630 = vrot.lane.b32.xlu0 %v628, 116
        %v631 = vpop.permute.xlu0 %630
        %v633 = vadd.f32 %v569, %v631
        %s634 = sld [smem:[#allocation5 + $0x5a]]
        %v635 = vstv %s634
        %v636 = vmul.f32 %v635, %v257
        %638 = vrot.lane.b32.xlu0 %v636, 116
        %v639 = vpop.permute.xlu0 %638
        %v641 = vadd.f32 %v577, %v639
        %s642 = sld [smem:[#allocation5 + $0x76]]
        %v643 = vstv %s642
        %v644 = vmul.f32 %v643, %v257
        %646 = vrot.lane.b32.xlu0 %v644, 116
        %v647 = vpop.permute.xlu0 %646
        %v649 = vadd.f32 %v585, %v647
        %s650 = sld [smem:[#allocation5 + $0x92]]
        %v651 = vstv %s650
        %v652 = vmul.f32 %v651, %v257
        %654 = vrot.lane.b32.xlu0 %v652, 116
        %v655 = vpop.permute.xlu0 %654
        %v657 = vadd.f32 %v593, %v655
        %s658 = sld [smem:[#allocation5 + $0xae]]
        %v659 = vstv %s658
        %v660 = vmul.f32 %v659, %v257
        %662 = vrot.lane.b32.xlu0 %v660, 116
        %v663 = vpop.permute.xlu0 %662
        %v665 = vadd.f32 %v601, %v663
        %s666 = sld [smem:[#allocation5 + $0xca]]
        %v667 = vstv %s666
        %v668 = vmul.f32 %v667, %v257
        %670 = vrot.lane.b32.xlu0 %v668, 116
        %v671 = vpop.permute.xlu0 %670
        %v673 = vadd.f32 %v609, %v671
        %s674 = scalar_lea.vmem %s198, 4 [#allocation2]
        %v675 = vld [vmem:[%s674] sm:$0xf]
        %s676 = sld [smem:[#allocation5 + $0x7]]
        %v677 = vstv %s676
        %v678 = vmul.f32 %v677, %v675
        %v679 = vadd.f32 %v617, %v678
        %s680 = sld [smem:[#allocation5 + $0x23]]
        %v681 = vstv %s680
        %v682 = vmul.f32 %v681, %v675
        %v683 = vadd.f32 %v625, %v682
        %s684 = sld [smem:[#allocation5 + $0x3f]]
        %v685 = vstv %s684
        %v686 = vmul.f32 %v685, %v675
        %v687 = vadd.f32 %v633, %v686
        %s688 = sld [smem:[#allocation5 + $0x5b]]
        %v689 = vstv %s688
        %v690 = vmul.f32 %v689, %v675
        %v691 = vadd.f32 %v641, %v690
        %s692 = sld [smem:[#allocation5 + $0x77]]
        %v693 = vstv %s692
        %v694 = vmul.f32 %v693, %v675
        %v695 = vadd.f32 %v649, %v694
        %s696 = sld [smem:[#allocation5 + $0x93]]
        %v697 = vstv %s696
        %v698 = vmul.f32 %v697, %v675
        %v699 = vadd.f32 %v657, %v698
        %s700 = sld [smem:[#allocation5 + $0xaf]]
        %v701 = vstv %s700
        %v702 = vmul.f32 %v701, %v675
        %v703 = vadd.f32 %v665, %v702
        %s704 = sld [smem:[#allocation5 + $0xcb]]
        %v705 = vstv %s704
        %v706 = vmul.f32 %v705, %v675
        %v707 = vadd.f32 %v673, %v706
        %s708 = sld [smem:[#allocation5 + $0x8]]
        %v709 = vstv %s708
        %v710 = vmul.f32 %v709, %v675
        %712 = vrot.lane.b32.xlu0 %v710, 126
        %v713 = vpop.permute.xlu0 %712
        %v715 = vadd.f32 %v679, %v713
        %s716 = sld [smem:[#allocation5 + $0x24]]
        %v717 = vstv %s716
        %v718 = vmul.f32 %v717, %v675
        %720 = vrot.lane.b32.xlu0 %v718, 126
        %v721 = vpop.permute.xlu0 %720
        %v723 = vadd.f32 %v683, %v721
        %s724 = sld [smem:[#allocation5 + $0x40]]
        %v725 = vstv %s724
        %v726 = vmul.f32 %v725, %v675
        %728 = vrot.lane.b32.xlu0 %v726, 126
        %v729 = vpop.permute.xlu0 %728
        %v731 = vadd.f32 %v687, %v729
        %s732 = sld [smem:[#allocation5 + $0x5c]]
        %v733 = vstv %s732
        %v734 = vmul.f32 %v733, %v675
        %736 = vrot.lane.b32.xlu0 %v734, 126
        %v737 = vpop.permute.xlu0 %736
        %v739 = vadd.f32 %v691, %v737
        %s740 = sld [smem:[#allocation5 + $0x78]]
        %v741 = vstv %s740
        %v742 = vmul.f32 %v741, %v675
        %744 = vrot.lane.b32.xlu0 %v742, 126
        %v745 = vpop.permute.xlu0 %744
        %v747 = vadd.f32 %v695, %v745
        %s748 = sld [smem:[#allocation5 + $0x94]]
        %v749 = vstv %s748
        %v750 = vmul.f32 %v749, %v675
        %752 = vrot.lane.b32.xlu0 %v750, 126
        %v753 = vpop.permute.xlu0 %752
        %v755 = vadd.f32 %v699, %v753
        %s756 = sld [smem:[#allocation5 + $0xb0]]
        %v757 = vstv %s756
        %v758 = vmul.f32 %v757, %v675
        %760 = vrot.lane.b32.xlu0 %v758, 126
        %v761 = vpop.permute.xlu0 %760
        %v763 = vadd.f32 %v703, %v761
        %s764 = sld [smem:[#allocation5 + $0xcc]]
        %v765 = vstv %s764
        %v766 = vmul.f32 %v765, %v675
        %768 = vrot.lane.b32.xlu0 %v766, 126
        %v769 = vpop.permute.xlu0 %768
        %v771 = vadd.f32 %v707, %v769
        %s772 = sld [smem:[#allocation5 + $0x9]]
        %v773 = vstv %s772
        %v774 = vmul.f32 %v773, %v675
        %776 = vrot.lane.b32.xlu0 %v774, 124
        %v777 = vpop.permute.xlu0 %776
        %v779 = vadd.f32 %v715, %v777
        %s780 = sld [smem:[#allocation5 + $0x25]]
        %v781 = vstv %s780
        %v782 = vmul.f32 %v781, %v675
        %784 = vrot.lane.b32.xlu0 %v782, 124
        %v785 = vpop.permute.xlu0 %784
        %v787 = vadd.f32 %v723, %v785
        %s788 = sld [smem:[#allocation5 + $0x41]]
        %v789 = vstv %s788
        %v790 = vmul.f32 %v789, %v675
        %792 = vrot.lane.b32.xlu0 %v790, 124
        %v793 = vpop.permute.xlu0 %792
        %v795 = vadd.f32 %v731, %v793
        %s796 = sld [smem:[#allocation5 + $0x5d]]
        %v797 = vstv %s796
        %v798 = vmul.f32 %v797, %v675
        %800 = vrot.lane.b32.xlu0 %v798, 124
        %v801 = vpop.permute.xlu0 %800
        %v803 = vadd.f32 %v739, %v801
        %s804 = sld [smem:[#allocation5 + $0x79]]
        %v805 = vstv %s804
        %v806 = vmul.f32 %v805, %v675
        %808 = vrot.lane.b32.xlu0 %v806, 124
        %v809 = vpop.permute.xlu0 %808
        %v811 = vadd.f32 %v747, %v809
        %s812 = sld [smem:[#allocation5 + $0x95]]
        %v813 = vstv %s812
        %v814 = vmul.f32 %v813, %v675
        %816 = vrot.lane.b32.xlu0 %v814, 124
        %v817 = vpop.permute.xlu0 %816
        %v819 = vadd.f32 %v755, %v817
        %s820 = sld [smem:[#allocation5 + $0xb1]]
        %v821 = vstv %s820
        %v822 = vmul.f32 %v821, %v675
        %824 = vrot.lane.b32.xlu0 %v822, 124
        %v825 = vpop.permute.xlu0 %824
        %v827 = vadd.f32 %v763, %v825
        %s828 = sld [smem:[#allocation5 + $0xcd]]
        %v829 = vstv %s828
        %v830 = vmul.f32 %v829, %v675
        %832 = vrot.lane.b32.xlu0 %v830, 124
        %v833 = vpop.permute.xlu0 %832
        %v835 = vadd.f32 %v771, %v833
        %s836 = sld [smem:[#allocation5 + $0xa]]
        %v837 = vstv %s836
        %v838 = vmul.f32 %v837, %v675
        %840 = vrot.lane.b32.xlu0 %v838, 122
        %v841 = vpop.permute.xlu0 %840
        %v843 = vadd.f32 %v779, %v841
        %s844 = sld [smem:[#allocation5 + $0x26]]
        %v845 = vstv %s844
        %v846 = vmul.f32 %v845, %v675
        %848 = vrot.lane.b32.xlu0 %v846, 122
        %v849 = vpop.permute.xlu0 %848
        %v851 = vadd.f32 %v787, %v849
        %s852 = sld [smem:[#allocation5 + $0x42]]
        %v853 = vstv %s852
        %v854 = vmul.f32 %v853, %v675
        %856 = vrot.lane.b32.xlu0 %v854, 122
        %v857 = vpop.permute.xlu0 %856
        %v859 = vadd.f32 %v795, %v857
        %s860 = sld [smem:[#allocation5 + $0x5e]]
        %v861 = vstv %s860
        %v862 = vmul.f32 %v861, %v675
        %864 = vrot.lane.b32.xlu0 %v862, 122
        %v865 = vpop.permute.xlu0 %864
        %v867 = vadd.f32 %v803, %v865
        %s868 = sld [smem:[#allocation5 + $0x7a]]
        %v869 = vstv %s868
        %v870 = vmul.f32 %v869, %v675
        %872 = vrot.lane.b32.xlu0 %v870, 122
        %v873 = vpop.permute.xlu0 %872
        %v875 = vadd.f32 %v811, %v873
        %s876 = sld [smem:[#allocation5 + $0x96]]
        %v877 = vstv %s876
        %v878 = vmul.f32 %v877, %v675
        %880 = vrot.lane.b32.xlu0 %v878, 122
        %v881 = vpop.permute.xlu0 %880
        %v883 = vadd.f32 %v819, %v881
        %s884 = sld [smem:[#allocation5 + $0xb2]]
        %v885 = vstv %s884
        %v886 = vmul.f32 %v885, %v675
        %888 = vrot.lane.b32.xlu0 %v886, 122
        %v889 = vpop.permute.xlu0 %888
        %v891 = vadd.f32 %v827, %v889
        %s892 = sld [smem:[#allocation5 + $0xce]]
        %v893 = vstv %s892
        %v894 = vmul.f32 %v893, %v675
        %896 = vrot.lane.b32.xlu0 %v894, 122
        %v897 = vpop.permute.xlu0 %896
        %v899 = vadd.f32 %v835, %v897
        %s900 = sld [smem:[#allocation5 + $0xb]]
        %v901 = vstv %s900
        %v902 = vmul.f32 %v901, %v675
        %904 = vrot.lane.b32.xlu0 %v902, 120
        %v905 = vpop.permute.xlu0 %904
        %v907 = vadd.f32 %v843, %v905
        %s908 = sld [smem:[#allocation5 + $0x27]]
        %v909 = vstv %s908
        %v910 = vmul.f32 %v909, %v675
        %912 = vrot.lane.b32.xlu0 %v910, 120
        %v913 = vpop.permute.xlu0 %912
        %v915 = vadd.f32 %v851, %v913
        %s916 = sld [smem:[#allocation5 + $0x43]]
        %v917 = vstv %s916
        %v918 = vmul.f32 %v917, %v675
        %920 = vrot.lane.b32.xlu0 %v918, 120
        %v921 = vpop.permute.xlu0 %920
        %v923 = vadd.f32 %v859, %v921
        %s924 = sld [smem:[#allocation5 + $0x5f]]
        %v925 = vstv %s924
        %v926 = vmul.f32 %v925, %v675
        %928 = vrot.lane.b32.xlu0 %v926, 120
        %v929 = vpop.permute.xlu0 %928
        %v931 = vadd.f32 %v867, %v929
        %s932 = sld [smem:[#allocation5 + $0x7b]]
        %v933 = vstv %s932
        %v934 = vmul.f32 %v933, %v675
        %936 = vrot.lane.b32.xlu0 %v934, 120
        %v937 = vpop.permute.xlu0 %936
        %v939 = vadd.f32 %v875, %v937
        %s940 = sld [smem:[#allocation5 + $0x97]]
        %v941 = vstv %s940
        %v942 = vmul.f32 %v941, %v675
        %944 = vrot.lane.b32.xlu0 %v942, 120
        %v945 = vpop.permute.xlu0 %944
        %v947 = vadd.f32 %v883, %v945
        %s948 = sld [smem:[#allocation5 + $0xb3]]
        %v949 = vstv %s948
        %v950 = vmul.f32 %v949, %v675
        %952 = vrot.lane.b32.xlu0 %v950, 120
        %v953 = vpop.permute.xlu0 %952
        %v955 = vadd.f32 %v891, %v953
        %s956 = sld [smem:[#allocation5 + $0xcf]]
        %v957 = vstv %s956
        %v958 = vmul.f32 %v957, %v675
        %960 = vrot.lane.b32.xlu0 %v958, 120
        %v961 = vpop.permute.xlu0 %960
        %v963 = vadd.f32 %v899, %v961
        %s964 = sld [smem:[#allocation5 + $0xc]]
        %v965 = vstv %s964
        %v966 = vmul.f32 %v965, %v675
        %968 = vrot.lane.b32.xlu0 %v966, 118
        %v969 = vpop.permute.xlu0 %968
        %v971 = vadd.f32 %v907, %v969
        %s972 = sld [smem:[#allocation5 + $0x28]]
        %v973 = vstv %s972
        %v974 = vmul.f32 %v973, %v675
        %976 = vrot.lane.b32.xlu0 %v974, 118
        %v977 = vpop.permute.xlu0 %976
        %v979 = vadd.f32 %v915, %v977
        %s980 = sld [smem:[#allocation5 + $0x44]]
        %v981 = vstv %s980
        %v982 = vmul.f32 %v981, %v675
        %984 = vrot.lane.b32.xlu0 %v982, 118
        %v985 = vpop.permute.xlu0 %984
        %v987 = vadd.f32 %v923, %v985
        %s988 = sld [smem:[#allocation5 + $0x60]]
        %v989 = vstv %s988
        %v990 = vmul.f32 %v989, %v675
        %992 = vrot.lane.b32.xlu0 %v990, 118
        %v993 = vpop.permute.xlu0 %992
        %v995 = vadd.f32 %v931, %v993
        %s996 = sld [smem:[#allocation5 + $0x7c]]
        %v997 = vstv %s996
        %v998 = vmul.f32 %v997, %v675
        %1000 = vrot.lane.b32.xlu0 %v998, 118
        %v1001 = vpop.permute.xlu0 %1000
        %v1003 = vadd.f32 %v939, %v1001
        %s1004 = sld [smem:[#allocation5 + $0x98]]
        %v1005 = vstv %s1004
        %v1006 = vmul.f32 %v1005, %v675
        %1008 = vrot.lane.b32.xlu0 %v1006, 118
        %v1009 = vpop.permute.xlu0 %1008
        %v1011 = vadd.f32 %v947, %v1009
        %s1012 = sld [smem:[#allocation5 + $0xb4]]
        %v1013 = vstv %s1012
        %v1014 = vmul.f32 %v1013, %v675
        %1016 = vrot.lane.b32.xlu0 %v1014, 118
        %v1017 = vpop.permute.xlu0 %1016
        %v1019 = vadd.f32 %v955, %v1017
        %s1020 = sld [smem:[#allocation5 + $0xd0]]
        %v1021 = vstv %s1020
        %v1022 = vmul.f32 %v1021, %v675
        %1024 = vrot.lane.b32.xlu0 %v1022, 118
        %v1025 = vpop.permute.xlu0 %1024
        %v1027 = vadd.f32 %v963, %v1025
        %s1028 = sld [smem:[#allocation5 + $0xd]]
        %v1029 = vstv %s1028
        %v1030 = vmul.f32 %v1029, %v675
        %1032 = vrot.lane.b32.xlu0 %v1030, 116
        %v1033 = vpop.permute.xlu0 %1032
        %v1035 = vadd.f32 %v971, %v1033
        %s1036 = sld [smem:[#allocation5 + $0x29]]
        %v1037 = vstv %s1036
        %v1038 = vmul.f32 %v1037, %v675
        %1040 = vrot.lane.b32.xlu0 %v1038, 116
        %v1041 = vpop.permute.xlu0 %1040
        %v1043 = vadd.f32 %v979, %v1041
        %s1044 = sld [smem:[#allocation5 + $0x45]]
        %v1045 = vstv %s1044
        %v1046 = vmul.f32 %v1045, %v675
        %1048 = vrot.lane.b32.xlu0 %v1046, 116
        %v1049 = vpop.permute.xlu0 %1048
        %v1051 = vadd.f32 %v987, %v1049
        %s1052 = sld [smem:[#allocation5 + $0x61]]
        %v1053 = vstv %s1052
        %v1054 = vmul.f32 %v1053, %v675
        %1056 = vrot.lane.b32.xlu0 %v1054, 116
        %v1057 = vpop.permute.xlu0 %1056
        %v1059 = vadd.f32 %v995, %v1057
        %s1060 = sld [smem:[#allocation5 + $0x7d]]
        %v1061 = vstv %s1060
        %v1062 = vmul.f32 %v1061, %v675
        %1064 = vrot.lane.b32.xlu0 %v1062, 116
        %v1065 = vpop.permute.xlu0 %1064
        %v1067 = vadd.f32 %v1003, %v1065
        %s1068 = sld [smem:[#allocation5 + $0x99]]
        %v1069 = vstv %s1068
        %v1070 = vmul.f32 %v1069, %v675
        %1072 = vrot.lane.b32.xlu0 %v1070, 116
        %v1073 = vpop.permute.xlu0 %1072
        %v1075 = vadd.f32 %v1011, %v1073
        %s1076 = sld [smem:[#allocation5 + $0xb5]]
        %v1077 = vstv %s1076
        %v1078 = vmul.f32 %v1077, %v675
        %1080 = vrot.lane.b32.xlu0 %v1078, 116
        %v1081 = vpop.permute.xlu0 %1080
        %v1083 = vadd.f32 %v1019, %v1081
        %s1084 = sld [smem:[#allocation5 + $0xd1]]
        %v1085 = vstv %s1084
        %v1086 = vmul.f32 %v1085, %v675
        %1088 = vrot.lane.b32.xlu0 %v1086, 116
        %v1089 = vpop.permute.xlu0 %1088
        %v1091 = vadd.f32 %v1027, %v1089
        %s1092 = scalar_lea.vmem %s198, 8 [#allocation2]
        %v1093 = vld [vmem:[%s1092] sm:$0xf]
        %s1094 = sld [smem:[#allocation5 + $0xe]]
        %v1095 = vstv %s1094
        %v1096 = vmul.f32 %v1095, %v1093
        %v1097 = vadd.f32 %v1035, %v1096
        %s1098 = sld [smem:[#allocation5 + $0x2a]]
        %v1099 = vstv %s1098
        %v1100 = vmul.f32 %v1099, %v1093
        %v1101 = vadd.f32 %v1043, %v1100
        %s1102 = sld [smem:[#allocation5 + $0x46]]
        %v1103 = vstv %s1102
        %v1104 = vmul.f32 %v1103, %v1093
        %v1105 = vadd.f32 %v1051, %v1104
        %s1106 = sld [smem:[#allocation5 + $0x62]]
        %v1107 = vstv %s1106
        %v1108 = vmul.f32 %v1107, %v1093
        %v1109 = vadd.f32 %v1059, %v1108
        %s1110 = sld [smem:[#allocation5 + $0x7e]]
        %v1111 = vstv %s1110
        %v1112 = vmul.f32 %v1111, %v1093
        %v1113 = vadd.f32 %v1067, %v1112
        %s1114 = sld [smem:[#allocation5 + $0x9a]]
        %v1115 = vstv %s1114
        %v1116 = vmul.f32 %v1115, %v1093
        %v1117 = vadd.f32 %v1075, %v1116
        %s1118 = sld [smem:[#allocation5 + $0xb6]]
        %v1119 = vstv %s1118
        %v1120 = vmul.f32 %v1119, %v1093
        %v1121 = vadd.f32 %v1083, %v1120
        %s1122 = sld [smem:[#allocation5 + $0xd2]]
        %v1123 = vstv %s1122
        %v1124 = vmul.f32 %v1123, %v1093
        %v1125 = vadd.f32 %v1091, %v1124
        %s1126 = sld [smem:[#allocation5 + $0xf]]
        %v1127 = vstv %s1126
        %v1128 = vmul.f32 %v1127, %v1093
        %1130 = vrot.lane.b32.xlu0 %v1128, 126
        %v1131 = vpop.permute.xlu0 %1130
        %v1133 = vadd.f32 %v1097, %v1131
        %s1134 = sld [smem:[#allocation5 + $0x2b]]
        %v1135 = vstv %s1134
        %v1136 = vmul.f32 %v1135, %v1093
        %1138 = vrot.lane.b32.xlu0 %v1136, 126
        %v1139 = vpop.permute.xlu0 %1138
        %v1141 = vadd.f32 %v1101, %v1139
        %s1142 = sld [smem:[#allocation5 + $0x47]]
        %v1143 = vstv %s1142
        %v1144 = vmul.f32 %v1143, %v1093
        %1146 = vrot.lane.b32.xlu0 %v1144, 126
        %v1147 = vpop.permute.xlu0 %1146
        %v1149 = vadd.f32 %v1105, %v1147
        %s1150 = sld [smem:[#allocation5 + $0x63]]
        %v1151 = vstv %s1150
        %v1152 = vmul.f32 %v1151, %v1093
        %1154 = vrot.lane.b32.xlu0 %v1152, 126
        %v1155 = vpop.permute.xlu0 %1154
        %v1157 = vadd.f32 %v1109, %v1155
        %s1158 = sld [smem:[#allocation5 + $0x7f]]
        %v1159 = vstv %s1158
        %v1160 = vmul.f32 %v1159, %v1093
        %1162 = vrot.lane.b32.xlu0 %v1160, 126
        %v1163 = vpop.permute.xlu0 %1162
        %v1165 = vadd.f32 %v1113, %v1163
        %s1166 = sld [smem:[#allocation5 + $0x9b]]
        %v1167 = vstv %s1166
        %v1168 = vmul.f32 %v1167, %v1093
        %1170 = vrot.lane.b32.xlu0 %v1168, 126
        %v1171 = vpop.permute.xlu0 %1170
        %v1173 = vadd.f32 %v1117, %v1171
        %s1174 = sld [smem:[#allocation5 + $0xb7]]
        %v1175 = vstv %s1174
        %v1176 = vmul.f32 %v1175, %v1093
        %1178 = vrot.lane.b32.xlu0 %v1176, 126
        %v1179 = vpop.permute.xlu0 %1178
        %v1181 = vadd.f32 %v1121, %v1179
        %s1182 = sld [smem:[#allocation5 + $0xd3]]
        %v1183 = vstv %s1182
        %v1184 = vmul.f32 %v1183, %v1093
        %1186 = vrot.lane.b32.xlu0 %v1184, 126
        %v1187 = vpop.permute.xlu0 %1186
        %v1189 = vadd.f32 %v1125, %v1187
        %s1190 = sld [smem:[#allocation5 + $0x10]]
        %v1191 = vstv %s1190
        %v1192 = vmul.f32 %v1191, %v1093
        %1194 = vrot.lane.b32.xlu0 %v1192, 124
        %v1195 = vpop.permute.xlu0 %1194
        %v1197 = vadd.f32 %v1133, %v1195
        %s1198 = sld [smem:[#allocation5 + $0x2c]]
        %v1199 = vstv %s1198
        %v1200 = vmul.f32 %v1199, %v1093
        %1202 = vrot.lane.b32.xlu0 %v1200, 124
        %v1203 = vpop.permute.xlu0 %1202
        %v1205 = vadd.f32 %v1141, %v1203
        %s1206 = sld [smem:[#allocation5 + $0x48]]
        %v1207 = vstv %s1206
        %v1208 = vmul.f32 %v1207, %v1093
        %1210 = vrot.lane.b32.xlu0 %v1208, 124
        %v1211 = vpop.permute.xlu0 %1210
        %v1213 = vadd.f32 %v1149, %v1211
        %s1214 = sld [smem:[#allocation5 + $0x64]]
        %v1215 = vstv %s1214
        %v1216 = vmul.f32 %v1215, %v1093
        %1218 = vrot.lane.b32.xlu0 %v1216, 124
        %v1219 = vpop.permute.xlu0 %1218
        %v1221 = vadd.f32 %v1157, %v1219
        %s1222 = sld [smem:[#allocation5 + $0x80]]
        %v1223 = vstv %s1222
        %v1224 = vmul.f32 %v1223, %v1093
        %1226 = vrot.lane.b32.xlu0 %v1224, 124
        %v1227 = vpop.permute.xlu0 %1226
        %v1229 = vadd.f32 %v1165, %v1227
        %s1230 = sld [smem:[#allocation5 + $0x9c]]
        %v1231 = vstv %s1230
        %v1232 = vmul.f32 %v1231, %v1093
        %1234 = vrot.lane.b32.xlu0 %v1232, 124
        %v1235 = vpop.permute.xlu0 %1234
        %v1237 = vadd.f32 %v1173, %v1235
        %s1238 = sld [smem:[#allocation5 + $0xb8]]
        %v1239 = vstv %s1238
        %v1240 = vmul.f32 %v1239, %v1093
        %1242 = vrot.lane.b32.xlu0 %v1240, 124
        %v1243 = vpop.permute.xlu0 %1242
        %v1245 = vadd.f32 %v1181, %v1243
        %s1246 = sld [smem:[#allocation5 + $0xd4]]
        %v1247 = vstv %s1246
        %v1248 = vmul.f32 %v1247, %v1093
        %1250 = vrot.lane.b32.xlu0 %v1248, 124
        %v1251 = vpop.permute.xlu0 %1250
        %v1253 = vadd.f32 %v1189, %v1251
        %s1254 = sld [smem:[#allocation5 + $0x11]]
        %v1255 = vstv %s1254
        %v1256 = vmul.f32 %v1255, %v1093
        %1258 = vrot.lane.b32.xlu0 %v1256, 122
        %v1259 = vpop.permute.xlu0 %1258
        %v1261 = vadd.f32 %v1197, %v1259
        %s1262 = sld [smem:[#allocation5 + $0x2d]]
        %v1263 = vstv %s1262
        %v1264 = vmul.f32 %v1263, %v1093
        %1266 = vrot.lane.b32.xlu0 %v1264, 122
        %v1267 = vpop.permute.xlu0 %1266
        %v1269 = vadd.f32 %v1205, %v1267
        %s1270 = sld [smem:[#allocation5 + $0x49]]
        %v1271 = vstv %s1270
        %v1272 = vmul.f32 %v1271, %v1093
        %1274 = vrot.lane.b32.xlu0 %v1272, 122
        %v1275 = vpop.permute.xlu0 %1274
        %v1277 = vadd.f32 %v1213, %v1275
        %s1278 = sld [smem:[#allocation5 + $0x65]]
        %v1279 = vstv %s1278
        %v1280 = vmul.f32 %v1279, %v1093
        %1282 = vrot.lane.b32.xlu0 %v1280, 122
        %v1283 = vpop.permute.xlu0 %1282
        %v1285 = vadd.f32 %v1221, %v1283
        %s1286 = sld [smem:[#allocation5 + $0x81]]
        %v1287 = vstv %s1286
        %v1288 = vmul.f32 %v1287, %v1093
        %1290 = vrot.lane.b32.xlu0 %v1288, 122
        %v1291 = vpop.permute.xlu0 %1290
        %v1293 = vadd.f32 %v1229, %v1291
        %s1294 = sld [smem:[#allocation5 + $0x9d]]
        %v1295 = vstv %s1294
        %v1296 = vmul.f32 %v1295, %v1093
        %1298 = vrot.lane.b32.xlu0 %v1296, 122
        %v1299 = vpop.permute.xlu0 %1298
        %v1301 = vadd.f32 %v1237, %v1299
        %s1302 = sld [smem:[#allocation5 + $0xb9]]
        %v1303 = vstv %s1302
        %v1304 = vmul.f32 %v1303, %v1093
        %1306 = vrot.lane.b32.xlu0 %v1304, 122
        %v1307 = vpop.permute.xlu0 %1306
        %v1309 = vadd.f32 %v1245, %v1307
        %s1310 = sld [smem:[#allocation5 + $0xd5]]
        %v1311 = vstv %s1310
        %v1312 = vmul.f32 %v1311, %v1093
        %1314 = vrot.lane.b32.xlu0 %v1312, 122
        %v1315 = vpop.permute.xlu0 %1314
        %v1317 = vadd.f32 %v1253, %v1315
        %s1318 = sld [smem:[#allocation5 + $0x12]]
        %v1319 = vstv %s1318
        %v1320 = vmul.f32 %v1319, %v1093
        %1322 = vrot.lane.b32.xlu0 %v1320, 120
        %v1323 = vpop.permute.xlu0 %1322
        %v1325 = vadd.f32 %v1261, %v1323
        %s1326 = sld [smem:[#allocation5 + $0x2e]]
        %v1327 = vstv %s1326
        %v1328 = vmul.f32 %v1327, %v1093
        %1330 = vrot.lane.b32.xlu0 %v1328, 120
        %v1331 = vpop.permute.xlu0 %1330
        %v1333 = vadd.f32 %v1269, %v1331
        %s1334 = sld [smem:[#allocation5 + $0x4a]]
        %v1335 = vstv %s1334
        %v1336 = vmul.f32 %v1335, %v1093
        %1338 = vrot.lane.b32.xlu0 %v1336, 120
        %v1339 = vpop.permute.xlu0 %1338
        %v1341 = vadd.f32 %v1277, %v1339
        %s1342 = sld [smem:[#allocation5 + $0x66]]
        %v1343 = vstv %s1342
        %v1344 = vmul.f32 %v1343, %v1093
        %1346 = vrot.lane.b32.xlu0 %v1344, 120
        %v1347 = vpop.permute.xlu0 %1346
        %v1349 = vadd.f32 %v1285, %v1347
        %s1350 = sld [smem:[#allocation5 + $0x82]]
        %v1351 = vstv %s1350
        %v1352 = vmul.f32 %v1351, %v1093
        %1354 = vrot.lane.b32.xlu0 %v1352, 120
        %v1355 = vpop.permute.xlu0 %1354
        %v1357 = vadd.f32 %v1293, %v1355
        %s1358 = sld [smem:[#allocation5 + $0x9e]]
        %v1359 = vstv %s1358
        %v1360 = vmul.f32 %v1359, %v1093
        %1362 = vrot.lane.b32.xlu0 %v1360, 120
        %v1363 = vpop.permute.xlu0 %1362
        %v1365 = vadd.f32 %v1301, %v1363
        %s1366 = sld [smem:[#allocation5 + $0xba]]
        %v1367 = vstv %s1366
        %v1368 = vmul.f32 %v1367, %v1093
        %1370 = vrot.lane.b32.xlu0 %v1368, 120
        %v1371 = vpop.permute.xlu0 %1370
        %v1373 = vadd.f32 %v1309, %v1371
        %s1374 = sld [smem:[#allocation5 + $0xd6]]
        %v1375 = vstv %s1374
        %v1376 = vmul.f32 %v1375, %v1093
        %1378 = vrot.lane.b32.xlu0 %v1376, 120
        %v1379 = vpop.permute.xlu0 %1378
        %v1381 = vadd.f32 %v1317, %v1379
        %s1382 = sld [smem:[#allocation5 + $0x13]]
        %v1383 = vstv %s1382
        %v1384 = vmul.f32 %v1383, %v1093
        %1386 = vrot.lane.b32.xlu0 %v1384, 118
        %v1387 = vpop.permute.xlu0 %1386
        %v1389 = vadd.f32 %v1325, %v1387
        %s1390 = sld [smem:[#allocation5 + $0x2f]]
        %v1391 = vstv %s1390
        %v1392 = vmul.f32 %v1391, %v1093
        %1394 = vrot.lane.b32.xlu0 %v1392, 118
        %v1395 = vpop.permute.xlu0 %1394
        %v1397 = vadd.f32 %v1333, %v1395
        %s1398 = sld [smem:[#allocation5 + $0x4b]]
        %v1399 = vstv %s1398
        %v1400 = vmul.f32 %v1399, %v1093
        %1402 = vrot.lane.b32.xlu0 %v1400, 118
        %v1403 = vpop.permute.xlu0 %1402
        %v1405 = vadd.f32 %v1341, %v1403
        %s1406 = sld [smem:[#allocation5 + $0x67]]
        %v1407 = vstv %s1406
        %v1408 = vmul.f32 %v1407, %v1093
        %1410 = vrot.lane.b32.xlu0 %v1408, 118
        %v1411 = vpop.permute.xlu0 %1410
        %v1413 = vadd.f32 %v1349, %v1411
        %s1414 = sld [smem:[#allocation5 + $0x83]]
        %v1415 = vstv %s1414
        %v1416 = vmul.f32 %v1415, %v1093
        %1418 = vrot.lane.b32.xlu0 %v1416, 118
        %v1419 = vpop.permute.xlu0 %1418
        %v1421 = vadd.f32 %v1357, %v1419
        %s1422 = sld [smem:[#allocation5 + $0x9f]]
        %v1423 = vstv %s1422
        %v1424 = vmul.f32 %v1423, %v1093
        %1426 = vrot.lane.b32.xlu0 %v1424, 118
        %v1427 = vpop.permute.xlu0 %1426
        %v1429 = vadd.f32 %v1365, %v1427
        %s1430 = sld [smem:[#allocation5 + $0xbb]]
        %v1431 = vstv %s1430
        %v1432 = vmul.f32 %v1431, %v1093
        %1434 = vrot.lane.b32.xlu0 %v1432, 118
        %v1435 = vpop.permute.xlu0 %1434
        %v1437 = vadd.f32 %v1373, %v1435
        %s1438 = sld [smem:[#allocation5 + $0xd7]]
        %v1439 = vstv %s1438
        %v1440 = vmul.f32 %v1439, %v1093
        %1442 = vrot.lane.b32.xlu0 %v1440, 118
        %v1443 = vpop.permute.xlu0 %1442
        %v1445 = vadd.f32 %v1381, %v1443
        %s1446 = sld [smem:[#allocation5 + $0x14]]
        %v1447 = vstv %s1446
        %v1448 = vmul.f32 %v1447, %v1093
        %1450 = vrot.lane.b32.xlu0 %v1448, 116
        %v1451 = vpop.permute.xlu0 %1450
        %v1453 = vadd.f32 %v1389, %v1451
        %s1454 = sld [smem:[#allocation5 + $0x30]]
        %v1455 = vstv %s1454
        %v1456 = vmul.f32 %v1455, %v1093
        %1458 = vrot.lane.b32.xlu0 %v1456, 116
        %v1459 = vpop.permute.xlu0 %1458
        %v1461 = vadd.f32 %v1397, %v1459
        %s1462 = sld [smem:[#allocation5 + $0x4c]]
        %v1463 = vstv %s1462
        %v1464 = vmul.f32 %v1463, %v1093
        %1466 = vrot.lane.b32.xlu0 %v1464, 116
        %v1467 = vpop.permute.xlu0 %1466
        %v1469 = vadd.f32 %v1405, %v1467
        %s1470 = sld [smem:[#allocation5 + $0x68]]
        %v1471 = vstv %s1470
        %v1472 = vmul.f32 %v1471, %v1093
        %1474 = vrot.lane.b32.xlu0 %v1472, 116
        %v1475 = vpop.permute.xlu0 %1474
        %v1477 = vadd.f32 %v1413, %v1475
        %s1478 = sld [smem:[#allocation5 + $0x84]]
        %v1479 = vstv %s1478
        %v1480 = vmul.f32 %v1479, %v1093
        %1482 = vrot.lane.b32.xlu0 %v1480, 116
        %v1483 = vpop.permute.xlu0 %1482
        %v1485 = vadd.f32 %v1421, %v1483
        %s1486 = sld [smem:[#allocation5 + $0xa0]]
        %v1487 = vstv %s1486
        %v1488 = vmul.f32 %v1487, %v1093
        %1490 = vrot.lane.b32.xlu0 %v1488, 116
        %v1491 = vpop.permute.xlu0 %1490
        %v1493 = vadd.f32 %v1429, %v1491
        %s1494 = sld [smem:[#allocation5 + $0xbc]]
        %v1495 = vstv %s1494
        %v1496 = vmul.f32 %v1495, %v1093
        %1498 = vrot.lane.b32.xlu0 %v1496, 116
        %v1499 = vpop.permute.xlu0 %1498
        %v1501 = vadd.f32 %v1437, %v1499
        %s1502 = sld [smem:[#allocation5 + $0xd8]]
        %v1503 = vstv %s1502
        %v1504 = vmul.f32 %v1503, %v1093
        %1506 = vrot.lane.b32.xlu0 %v1504, 116
        %v1507 = vpop.permute.xlu0 %1506
        %v1509 = vadd.f32 %v1445, %v1507
        %s1510 = scalar_lea.vmem %s198, 12 [#allocation2]
        %v1511 = vld [vmem:[%s1510] sm:$0xf]
        %s1512 = sld [smem:[#allocation5 + $0x15]]
        %v1513 = vstv %s1512
        %v1514 = vmul.f32 %v1513, %v1511
        %v1515 = vadd.f32 %v1453, %v1514
        %s1516 = sld [smem:[#allocation5 + $0x31]]
        %v1517 = vstv %s1516
        %v1518 = vmul.f32 %v1517, %v1511
        %v1519 = vadd.f32 %v1461, %v1518
        %s1520 = sld [smem:[#allocation5 + $0x4d]]
        %v1521 = vstv %s1520
        %v1522 = vmul.f32 %v1521, %v1511
        %v1523 = vadd.f32 %v1469, %v1522
        %s1524 = sld [smem:[#allocation5 + $0x69]]
        %v1525 = vstv %s1524
        %v1526 = vmul.f32 %v1525, %v1511
        %v1527 = vadd.f32 %v1477, %v1526
        %s1528 = sld [smem:[#allocation5 + $0x85]]
        %v1529 = vstv %s1528
        %v1530 = vmul.f32 %v1529, %v1511
        %v1531 = vadd.f32 %v1485, %v1530
        %s1532 = sld [smem:[#allocation5 + $0xa1]]
        %v1533 = vstv %s1532
        %v1534 = vmul.f32 %v1533, %v1511
        %v1535 = vadd.f32 %v1493, %v1534
        %s1536 = sld [smem:[#allocation5 + $0xbd]]
        %v1537 = vstv %s1536
        %v1538 = vmul.f32 %v1537, %v1511
        %v1539 = vadd.f32 %v1501, %v1538
        %s1540 = sld [smem:[#allocation5 + $0xd9]]
        %v1541 = vstv %s1540
        %v1542 = vmul.f32 %v1541, %v1511
        %v1543 = vadd.f32 %v1509, %v1542
        %s1544 = sld [smem:[#allocation5 + $0x16]]
        %v1545 = vstv %s1544
        %v1546 = vmul.f32 %v1545, %v1511
        %1548 = vrot.lane.b32.xlu0 %v1546, 126
        %v1549 = vpop.permute.xlu0 %1548
        %v1551 = vadd.f32 %v1515, %v1549
        %s1552 = sld [smem:[#allocation5 + $0x32]]
        %v1553 = vstv %s1552
        %v1554 = vmul.f32 %v1553, %v1511
        %1556 = vrot.lane.b32.xlu0 %v1554, 126
        %v1557 = vpop.permute.xlu0 %1556
        %v1559 = vadd.f32 %v1519, %v1557
        %s1560 = sld [smem:[#allocation5 + $0x4e]]
        %v1561 = vstv %s1560
        %v1562 = vmul.f32 %v1561, %v1511
        %1564 = vrot.lane.b32.xlu0 %v1562, 126
        %v1565 = vpop.permute.xlu0 %1564
        %v1567 = vadd.f32 %v1523, %v1565
        %s1568 = sld [smem:[#allocation5 + $0x6a]]
        %v1569 = vstv %s1568
        %v1570 = vmul.f32 %v1569, %v1511
        %1572 = vrot.lane.b32.xlu0 %v1570, 126
        %v1573 = vpop.permute.xlu0 %1572
        %v1575 = vadd.f32 %v1527, %v1573
        %s1576 = sld [smem:[#allocation5 + $0x86]]
        %v1577 = vstv %s1576
        %v1578 = vmul.f32 %v1577, %v1511
        %1580 = vrot.lane.b32.xlu0 %v1578, 126
        %v1581 = vpop.permute.xlu0 %1580
        %v1583 = vadd.f32 %v1531, %v1581
        %s1584 = sld [smem:[#allocation5 + $0xa2]]
        %v1585 = vstv %s1584
        %v1586 = vmul.f32 %v1585, %v1511
        %1588 = vrot.lane.b32.xlu0 %v1586, 126
        %v1589 = vpop.permute.xlu0 %1588
        %v1591 = vadd.f32 %v1535, %v1589
        %s1592 = sld [smem:[#allocation5 + $0xbe]]
        %v1593 = vstv %s1592
        %v1594 = vmul.f32 %v1593, %v1511
        %1596 = vrot.lane.b32.xlu0 %v1594, 126
        %v1597 = vpop.permute.xlu0 %1596
        %v1599 = vadd.f32 %v1539, %v1597
        %s1600 = sld [smem:[#allocation5 + $0xda]]
        %v1601 = vstv %s1600
        %v1602 = vmul.f32 %v1601, %v1511
        %1604 = vrot.lane.b32.xlu0 %v1602, 126
        %v1605 = vpop.permute.xlu0 %1604
        %v1607 = vadd.f32 %v1543, %v1605
        %s1608 = sld [smem:[#allocation5 + $0x17]]
        %v1609 = vstv %s1608
        %v1610 = vmul.f32 %v1609, %v1511
        %1612 = vrot.lane.b32.xlu0 %v1610, 124
        %v1613 = vpop.permute.xlu0 %1612
        %v1615 = vadd.f32 %v1551, %v1613
        %s1616 = sld [smem:[#allocation5 + $0x33]]
        %v1617 = vstv %s1616
        %v1618 = vmul.f32 %v1617, %v1511
        %1620 = vrot.lane.b32.xlu0 %v1618, 124
        %v1621 = vpop.permute.xlu0 %1620
        %v1623 = vadd.f32 %v1559, %v1621
        %s1624 = sld [smem:[#allocation5 + $0x4f]]
        %v1625 = vstv %s1624
        %v1626 = vmul.f32 %v1625, %v1511
        %1628 = vrot.lane.b32.xlu0 %v1626, 124
        %v1629 = vpop.permute.xlu0 %1628
        %v1631 = vadd.f32 %v1567, %v1629
        %s1632 = sld [smem:[#allocation5 + $0x6b]]
        %v1633 = vstv %s1632
        %v1634 = vmul.f32 %v1633, %v1511
        %1636 = vrot.lane.b32.xlu0 %v1634, 124
        %v1637 = vpop.permute.xlu0 %1636
        %v1639 = vadd.f32 %v1575, %v1637
        %s1640 = sld [smem:[#allocation5 + $0x87]]
        %v1641 = vstv %s1640
        %v1642 = vmul.f32 %v1641, %v1511
        %1644 = vrot.lane.b32.xlu0 %v1642, 124
        %v1645 = vpop.permute.xlu0 %1644
        %v1647 = vadd.f32 %v1583, %v1645
        %s1648 = sld [smem:[#allocation5 + $0xa3]]
        %v1649 = vstv %s1648
        %v1650 = vmul.f32 %v1649, %v1511
        %1652 = vrot.lane.b32.xlu0 %v1650, 124
        %v1653 = vpop.permute.xlu0 %1652
        %v1655 = vadd.f32 %v1591, %v1653
        %s1656 = sld [smem:[#allocation5 + $0xbf]]
        %v1657 = vstv %s1656
        %v1658 = vmul.f32 %v1657, %v1511
        %1660 = vrot.lane.b32.xlu0 %v1658, 124
        %v1661 = vpop.permute.xlu0 %1660
        %v1663 = vadd.f32 %v1599, %v1661
        %s1664 = sld [smem:[#allocation5 + $0xdb]]
        %v1665 = vstv %s1664
        %v1666 = vmul.f32 %v1665, %v1511
        %1668 = vrot.lane.b32.xlu0 %v1666, 124
        %v1669 = vpop.permute.xlu0 %1668
        %v1671 = vadd.f32 %v1607, %v1669
        %s1672 = sld [smem:[#allocation5 + $0x18]]
        %v1673 = vstv %s1672
        %v1674 = vmul.f32 %v1673, %v1511
        %1676 = vrot.lane.b32.xlu0 %v1674, 122
        %v1677 = vpop.permute.xlu0 %1676
        %v1679 = vadd.f32 %v1615, %v1677
        %s1680 = sld [smem:[#allocation5 + $0x34]]
        %v1681 = vstv %s1680
        %v1682 = vmul.f32 %v1681, %v1511
        %1684 = vrot.lane.b32.xlu0 %v1682, 122
        %v1685 = vpop.permute.xlu0 %1684
        %v1687 = vadd.f32 %v1623, %v1685
        %s1688 = sld [smem:[#allocation5 + $0x50]]
        %v1689 = vstv %s1688
        %v1690 = vmul.f32 %v1689, %v1511
        %1692 = vrot.lane.b32.xlu0 %v1690, 122
        %v1693 = vpop.permute.xlu0 %1692
        %v1695 = vadd.f32 %v1631, %v1693
        %s1696 = sld [smem:[#allocation5 + $0x6c]]
        %v1697 = vstv %s1696
        %v1698 = vmul.f32 %v1697, %v1511
        %1700 = vrot.lane.b32.xlu0 %v1698, 122
        %v1701 = vpop.permute.xlu0 %1700
        %v1703 = vadd.f32 %v1639, %v1701
        %s1704 = sld [smem:[#allocation5 + $0x88]]
        %v1705 = vstv %s1704
        %v1706 = vmul.f32 %v1705, %v1511
        %1708 = vrot.lane.b32.xlu0 %v1706, 122
        %v1709 = vpop.permute.xlu0 %1708
        %v1711 = vadd.f32 %v1647, %v1709
        %s1712 = sld [smem:[#allocation5 + $0xa4]]
        %v1713 = vstv %s1712
        %v1714 = vmul.f32 %v1713, %v1511
        %1716 = vrot.lane.b32.xlu0 %v1714, 122
        %v1717 = vpop.permute.xlu0 %1716
        %v1719 = vadd.f32 %v1655, %v1717
        %s1720 = sld [smem:[#allocation5 + $0xc0]]
        %v1721 = vstv %s1720
        %v1722 = vmul.f32 %v1721, %v1511
        %1724 = vrot.lane.b32.xlu0 %v1722, 122
        %v1725 = vpop.permute.xlu0 %1724
        %v1727 = vadd.f32 %v1663, %v1725
        %s1728 = sld [smem:[#allocation5 + $0xdc]]
        %v1729 = vstv %s1728
        %v1730 = vmul.f32 %v1729, %v1511
        %1732 = vrot.lane.b32.xlu0 %v1730, 122
        %v1733 = vpop.permute.xlu0 %1732
        %v1735 = vadd.f32 %v1671, %v1733
        %s1736 = sld [smem:[#allocation5 + $0x19]]
        %v1737 = vstv %s1736
        %v1738 = vmul.f32 %v1737, %v1511
        %1740 = vrot.lane.b32.xlu0 %v1738, 120
        %v1741 = vpop.permute.xlu0 %1740
        %v1743 = vadd.f32 %v1679, %v1741
        %s1744 = sld [smem:[#allocation5 + $0x35]]
        %v1745 = vstv %s1744
        %v1746 = vmul.f32 %v1745, %v1511
        %1748 = vrot.lane.b32.xlu0 %v1746, 120
        %v1749 = vpop.permute.xlu0 %1748
        %v1751 = vadd.f32 %v1687, %v1749
        %s1752 = sld [smem:[#allocation5 + $0x51]]
        %v1753 = vstv %s1752
        %v1754 = vmul.f32 %v1753, %v1511
        %1756 = vrot.lane.b32.xlu0 %v1754, 120
        %v1757 = vpop.permute.xlu0 %1756
        %v1759 = vadd.f32 %v1695, %v1757
        %s1760 = sld [smem:[#allocation5 + $0x6d]]
        %v1761 = vstv %s1760
        %v1762 = vmul.f32 %v1761, %v1511
        %1764 = vrot.lane.b32.xlu0 %v1762, 120
        %v1765 = vpop.permute.xlu0 %1764
        %v1767 = vadd.f32 %v1703, %v1765
        %s1768 = sld [smem:[#allocation5 + $0x89]]
        %v1769 = vstv %s1768
        %v1770 = vmul.f32 %v1769, %v1511
        %1772 = vrot.lane.b32.xlu0 %v1770, 120
        %v1773 = vpop.permute.xlu0 %1772
        %v1775 = vadd.f32 %v1711, %v1773
        %s1776 = sld [smem:[#allocation5 + $0xa5]]
        %v1777 = vstv %s1776
        %v1778 = vmul.f32 %v1777, %v1511
        %1780 = vrot.lane.b32.xlu0 %v1778, 120
        %v1781 = vpop.permute.xlu0 %1780
        %v1783 = vadd.f32 %v1719, %v1781
        %s1784 = sld [smem:[#allocation5 + $0xc1]]
        %v1785 = vstv %s1784
        %v1786 = vmul.f32 %v1785, %v1511
        %1788 = vrot.lane.b32.xlu0 %v1786, 120
        %v1789 = vpop.permute.xlu0 %1788
        %v1791 = vadd.f32 %v1727, %v1789
        %s1792 = sld [smem:[#allocation5 + $0xdd]]
        %v1793 = vstv %s1792
        %v1794 = vmul.f32 %v1793, %v1511
        %1796 = vrot.lane.b32.xlu0 %v1794, 120
        %v1797 = vpop.permute.xlu0 %1796
        %v1799 = vadd.f32 %v1735, %v1797
        %s1800 = sld [smem:[#allocation5 + $0x1a]]
        %v1801 = vstv %s1800
        %v1802 = vmul.f32 %v1801, %v1511
        %1804 = vrot.lane.b32.xlu0 %v1802, 118
        %v1805 = vpop.permute.xlu0 %1804
        %v1807 = vadd.f32 %v1743, %v1805
        %s1808 = sld [smem:[#allocation5 + $0x36]]
        %v1809 = vstv %s1808
        %v1810 = vmul.f32 %v1809, %v1511
        %1812 = vrot.lane.b32.xlu0 %v1810, 118
        %v1813 = vpop.permute.xlu0 %1812
        %v1815 = vadd.f32 %v1751, %v1813
        %s1816 = sld [smem:[#allocation5 + $0x52]]
        %v1817 = vstv %s1816
        %v1818 = vmul.f32 %v1817, %v1511
        %1820 = vrot.lane.b32.xlu0 %v1818, 118
        %v1821 = vpop.permute.xlu0 %1820
        %v1823 = vadd.f32 %v1759, %v1821
        %s1824 = sld [smem:[#allocation5 + $0x6e]]
        %v1825 = vstv %s1824
        %v1826 = vmul.f32 %v1825, %v1511
        %1828 = vrot.lane.b32.xlu0 %v1826, 118
        %v1829 = vpop.permute.xlu0 %1828
        %v1831 = vadd.f32 %v1767, %v1829
        %s1832 = sld [smem:[#allocation5 + $0x8a]]
        %v1833 = vstv %s1832
        %v1834 = vmul.f32 %v1833, %v1511
        %1836 = vrot.lane.b32.xlu0 %v1834, 118
        %v1837 = vpop.permute.xlu0 %1836
        %v1839 = vadd.f32 %v1775, %v1837
        %s1840 = sld [smem:[#allocation5 + $0xa6]]
        %v1841 = vstv %s1840
        %v1842 = vmul.f32 %v1841, %v1511
        %1844 = vrot.lane.b32.xlu0 %v1842, 118
        %v1845 = vpop.permute.xlu0 %1844
        %v1847 = vadd.f32 %v1783, %v1845
        %s1848 = sld [smem:[#allocation5 + $0xc2]]
        %v1849 = vstv %s1848
        %v1850 = vmul.f32 %v1849, %v1511
        %1852 = vrot.lane.b32.xlu0 %v1850, 118
        %v1853 = vpop.permute.xlu0 %1852
        %v1855 = vadd.f32 %v1791, %v1853
        %s1856 = sld [smem:[#allocation5 + $0xde]]
        %v1857 = vstv %s1856
        %v1858 = vmul.f32 %v1857, %v1511
        %1860 = vrot.lane.b32.xlu0 %v1858, 118
        %v1861 = vpop.permute.xlu0 %1860
        %v1863 = vadd.f32 %v1799, %v1861
        %s1864 = sld [smem:[#allocation5 + $0x1b]]
        %v1865 = vstv %s1864
        %v1866 = vmul.f32 %v1865, %v1511
        %1868 = vrot.lane.b32.xlu0 %v1866, 116
        %v1869 = vpop.permute.xlu0 %1868
        %v1871 = vadd.f32 %v1807, %v1869
        %s1872 = sld [smem:[#allocation5 + $0x37]]
        %v1873 = vstv %s1872
        %v1874 = vmul.f32 %v1873, %v1511
        %1876 = vrot.lane.b32.xlu0 %v1874, 116
        %v1877 = vpop.permute.xlu0 %1876
        %v1879 = vadd.f32 %v1815, %v1877
        %s1880 = sld [smem:[#allocation5 + $0x53]]
        %v1881 = vstv %s1880
        %v1882 = vmul.f32 %v1881, %v1511
        %1884 = vrot.lane.b32.xlu0 %v1882, 116
        %v1885 = vpop.permute.xlu0 %1884
        %v1887 = vadd.f32 %v1823, %v1885
        %s1888 = sld [smem:[#allocation5 + $0x6f]]
        %v1889 = vstv %s1888
        %v1890 = vmul.f32 %v1889, %v1511
        %1892 = vrot.lane.b32.xlu0 %v1890, 116
        %v1893 = vpop.permute.xlu0 %1892
        %v1895 = vadd.f32 %v1831, %v1893
        %s1896 = sld [smem:[#allocation5 + $0x8b]]
        %v1897 = vstv %s1896
        %v1898 = vmul.f32 %v1897, %v1511
        %1900 = vrot.lane.b32.xlu0 %v1898, 116
        %v1901 = vpop.permute.xlu0 %1900
        %v1903 = vadd.f32 %v1839, %v1901
        %s1904 = sld [smem:[#allocation5 + $0xa7]]
        %v1905 = vstv %s1904
        %v1906 = vmul.f32 %v1905, %v1511
        %1908 = vrot.lane.b32.xlu0 %v1906, 116
        %v1909 = vpop.permute.xlu0 %1908
        %v1911 = vadd.f32 %v1847, %v1909
        %s1912 = sld [smem:[#allocation5 + $0xc3]]
        %v1913 = vstv %s1912
        %v1914 = vmul.f32 %v1913, %v1511
        %1916 = vrot.lane.b32.xlu0 %v1914, 116
        %v1917 = vpop.permute.xlu0 %1916
        %v1919 = vadd.f32 %v1855, %v1917
        %s1920 = sld [smem:[#allocation5 + $0xdf]]
        %v1921 = vstv %s1920
        %v1922 = vmul.f32 %v1921, %v1511
        %1924 = vrot.lane.b32.xlu0 %v1922, 116
        %v1925 = vpop.permute.xlu0 %1924
        %v1927 = vadd.f32 %v1863, %v1925
        %vm1928 = vcmask 27648
        %1929 = vst.msk [vmem:[%s240] sm:$0xf] %vm1928, %v1871
        %s1930 = scalar_lea.vmem %s240, 4
        %1931 = vst.msk [vmem:[%s1930] sm:$0xf] %vm1928, %v1879
        %s1932 = scalar_lea.vmem %s240, 8
        %1933 = vst.msk [vmem:[%s1932] sm:$0xf] %vm1928, %v1887
        %s1934 = scalar_lea.vmem %s240, 12
        %1935 = vst.msk [vmem:[%s1934] sm:$0xf] %vm1928, %v1895
        %s1936 = scalar_lea.vmem %s240, 16
        %1937 = vst.msk [vmem:[%s1936] sm:$0xf] %vm1928, %v1903
        %s1938 = scalar_lea.vmem %s240, 20
        %1939 = vst.msk [vmem:[%s1938] sm:$0xf] %vm1928, %v1911
        %s1940 = scalar_lea.vmem %s240, 24
        %1941 = vst.msk [vmem:[%s1940] sm:$0xf] %vm1928, %v1919
        %s1942 = scalar_lea.vmem %s240, 28
        %1943 = vst.msk [vmem:[%s1942] sm:$0xf] %vm1928, %v1927
        %p1944 = scmp.lt.s32.totalorder %s23, 1
        %s1945 = scalar_select %p1944, %s23, 1
        %p1946 = scmp.lt.s32.totalorder %s24, 0
        %s1947 = scalar_select %p1946, %s24, 0
        %s1948 = smul.addr %s1945, 8
        %s1949 = sadd.s32 %s1947, %s1948
        %s1950 = smul.addr %s1949, 4
        %s1951 = scalar_lea.vmem %s3, %s1950
        // Predicated region
        $region45: #{tpu_custom_call.1} parent=31 // pred_check
          %p1952 = pneg %p121
        $region46: #{tpu_custom_call.1} parent=31 // pred_check_branch
          %1954 = sbr.rel (%p1952) target = $region48
        $region47: #{tpu_custom_call.1} parent=31 // pred_region
          _
        $region48: #{tpu_custom_call.1} parent=31 // pred_fallthru
          _
      $region32: #{tpu_custom_call.1} parent=5 // pred_fallthru
        _
      %p1955 = scmp.le.s32.totalorder 2, %s14
      // Predicated region
      $region49: #{tpu_custom_call.1} parent=5 // pred_check
        %p1956 = pneg %p1955
      $region50: #{tpu_custom_call.1} parent=5 // pred_check_branch
        %1958 = sbr.rel (%p1956) target = $region52
      $region51: #{tpu_custom_call.1} parent=5 // pred_region
        %s1959 = ssub.s32 %s14, 2
        // Predicated region
        $region53: #{tpu_custom_call.1} parent=51 // pred_check
          %p1960 = pneg %p127
        $region54: #{tpu_custom_call.1} parent=51 // pred_check_branch
          %1962 = sbr.rel (%p1960) target = $region56
        $region55: #{tpu_custom_call.1} parent=51 // pred_region
          %p1963 = scmp.lt.s32.totalorder %s25, 1
          %s1964 = scalar_select %p1963, %s25, 1
          %p1965 = scmp.lt.s32.totalorder %s26, 0
          %s1966 = scalar_select %p1965, %s26, 0
          %s1967 = smul.addr %s1964, 8
          %s1968 = sadd.s32 %s1966, %s1967
          %s1969 = smul.addr %s1968, 4
          %s1970 = scalar_lea.vmem %s3, %s1969
        $region56: #{tpu_custom_call.1} parent=51 // pred_fallthru
          _
      $region52: #{tpu_custom_call.1} parent=5 // pred_fallthru
        _
    $region6: #{tpu_custom_call.1} parent=1 // loop_footer
      %s18 = sadd.s32 1, %s14
    $region7: #{tpu_custom_call.1} parent=1 // loop_footer_branch
      %13 = sbr.rel target = $region3
    $region8: #{tpu_custom_call.1} parent=1 // loop_exit
      _
    %1971 = vsyncpa [#allocation3], 1
    %s1972 = scalar_lea.sflag [#allocation3], 1
    %1973 = vsyncpa %s1972, 1
    %1974 = vsyncpa [#allocation4], 1
    %s1975 = scalar_lea.sflag [#allocation4], 1
    %1976 = vsyncpa %s1975, 1
    %1977 = vsyncpa [#allocation7], 1

</llo_original>
